<compile_context>
chip_gen: v7x
topology: tpu7x:2x2x1
jax: 0.10.0
libtpu: 0.0.40
codegen_flags: <defaults>
</compile_context>

<pallas_src>
import jax
import jax.numpy as jnp
from jax.experimental import pallas as pl
from jax.experimental.pallas import tpu as pltpu

# ----- Config (small, synthetic, consistent with the module) -----------------
MAP_DIM = 256          # original: 100*100 flattened map
PREFERENCE_DIM = 2     # preference is B x 2 (get_index uses p[0], p[1])
ACTION_SPACE = 8
MULTIP_COUNT = 4
FEATURE_COUNT = 128
LEAKY_SLOPE = 0.01     # nn.LeakyReLU() default

SIDE_DIM = PREFERENCE_DIM + MULTIP_COUNT         # packed [pref0, pref1, onehot0..3]
OUT_LANES = 16         # lane-packed output: policy lanes [0,8), value lanes [8,10)
HID_WIDTH = (MULTIP_COUNT + 1) * FEATURE_COUNT   # 640: 4 actor heads + critic
MAX_TILE_B = 1024      # ~10 MiB live set per tile: fits every generation's VMEM


def _leaky_relu(x):
    return jnp.where(x >= 0, x, LEAKY_SLOPE * x)


def _round_up(x, m):
    return (x + m - 1) // m * m


def _choose_tiling(B):
    """Pick (padded_batch, tile_b) so that tile_b divides the padded batch.

    Padding is at most 7 rows (sublane alignment) in the common case — no
    full-array jnp.pad of obs.  Once the batch is >= 16 rows the tile is capped
    at half the batch so the 'parallel' grid axis has >= 2 steps (keeps both
    v7x TensorCores busy)."""
    Bp = _round_up(max(B, 1), 8)
    cap = min(MAX_TILE_B, Bp)
    if Bp >= 16:
        cap = min(cap, Bp // 2)
    cap = max(8, cap // 8 * 8)
    tile = 8
    t = cap
    while t >= 8:
        if Bp % t == 0:
            tile = t
            break
        t -= 8
    if tile < 256 and Bp > 4 * MAX_TILE_B:
        # Pathological (prime-ish) large batch: a tiny-tile grid would cost more
        # than one extra pad copy, so fall back to padding up to a 512 multiple.
        tile = 512
        Bp = _round_up(Bp, tile)
    return Bp, tile


# ----- Pallas kernel ----------------------------------------------------------
def multip_net_kernel(
    obs_ref, side_ref,
    wf_ref, bf_ref,
    w1_ref, w1p_ref, b1_ref,
    w2_ref, ba2_ref, bc2_ref,
    out_ref,
):
    obs = obs_ref[...]                         # (TB, MAP_DIM) bf16 (producer-supplied)
    side = side_ref[...]                       # (TB, 6) f32: [pref0, pref1, onehot0..3]

    # feature = LeakyReLU(Linear(MAP_DIM -> 128))   (bf16 MXU, f32 accum/epilogue)
    feat = jnp.dot(obs, wf_ref[...], preferred_element_type=jnp.float32) + bf_ref[...]
    feat = _leaky_relu(feat)                   # (TB, 128) f32

    # Fused first layer of all 4 actor heads + critic: (TB,128) @ (128,640) on the MXU.
    h = jnp.dot(feat.astype(jnp.bfloat16), w1_ref[...],
                preferred_element_type=jnp.float32)            # (TB, 640) f32
    # K=2 preference contraction stays on the VPU (two broadcast-FMAs, no MXU pass).
    w1p = w1p_ref[...]                                         # (2, 640) f32
    h = h + side[:, 0:1] * w1p[0:1, :] + side[:, 1:2] * w1p[1:2, :]
    h = _leaky_relu(h + b1_ref[...])                           # (TB, 640) f32
    h = h.astype(jnp.bfloat16)                 # single cast; slices below are 128-lane aligned

    # Second layer, split per head (no concatenate, no extra (TB,640) VMEM slab):
    # lanes [0,8) of w2 rows belong to the actor heads, lanes [8,10) of the critic
    # rows to the critic; all cross lanes / bias lanes are zero, so the blended
    # actor output and the critic output can simply be summed into one (TB,16) slab.
    F = FEATURE_COUNT
    out = jnp.dot(h[:, MULTIP_COUNT * F:], w2_ref[MULTIP_COUNT * F:, :],
                  preferred_element_type=jnp.float32) + bc2_ref[...]        # critic
    for m in range(MULTIP_COUNT):
        pm = jnp.dot(h[:, m * F:(m + 1) * F], w2_ref[m * F:(m + 1) * F, :],
                     preferred_element_type=jnp.float32)                    # (TB, 16)
        out = out + side[:, PREFERENCE_DIM + m:PREFERENCE_DIM + m + 1] * (
            pm + ba2_ref[m:m + 1, :])

    out_ref[...] = out                                         # (TB, 16) f32


# ----- Parameter fusion / padding into the kernel layout ----------------------
def prepare_params(params):
    M, F, A, P = MULTIP_COUNT, FEATURE_COUNT, ACTION_SPACE, PREFERENCE_DIM

    wf = params["wf"].astype(jnp.bfloat16)                    # (MAP_DIM, F)
    bf = params["bf"].astype(jnp.float32)                     # (1, F)

    # Fused first layer: actor heads then critic -> (F, (M+1)*F)
    w1 = jnp.concatenate(
        [params["wa1f"][m] for m in range(M)] + [params["wc1f"]], axis=1
    ).astype(jnp.bfloat16)                                    # (F, 640)
    w1p = jnp.concatenate(
        [params["wa1p"][m] for m in range(M)] + [params["wc1p"]], axis=1
    ).astype(jnp.float32)                                     # (P, 640)
    b1 = jnp.concatenate(
        [params["ba1"][m] for m in range(M)] + [params["bc1"]], axis=1
    ).astype(jnp.float32)                                     # (1, 640)

    # Second layer -> lane-packed output: policy lanes [0,A), value lanes [A,A+P).
    w2 = jnp.zeros(((M + 1) * F, OUT_LANES), jnp.float32)
    for m in range(M):
        w2 = w2.at[m * F:(m + 1) * F, 0:A].set(params["wa2"][m])
    w2 = w2.at[M * F:(M + 1) * F, A:A + P].set(params["wc2"])
    w2 = w2.astype(jnp.bfloat16)                              # (640, 16)

    ba2 = jnp.zeros((M, OUT_LANES), jnp.float32)
    for m in range(M):
        ba2 = ba2.at[m, 0:A].set(params["ba2"][m][0])
    bc2 = jnp.zeros((1, OUT_LANES), jnp.float32).at[0, A:A + P].set(params["bc2"][0])

    return {"wf": wf, "bf": bf, "w1": w1, "w1p": w1p, "b1": b1,
            "w2": w2, "ba2": ba2, "bc2": bc2}


# ----- Wrapper ----------------------------------------------------------------
@jax.jit
def multip_net_forward(obs, preference, fused):
    B = obs.shape[0]
    if obs.dtype != jnp.bfloat16:
        # Producer should stream obs as bf16 (halves the dominant HBM read);
        # cast here only as a fallback so the kernel always sees bf16.
        obs = obs.astype(jnp.bfloat16)

    # get_index(preference): int(arctan(p1/(p0+0.01)) // (pi/2/M)).
    # `//` already floors; `% M` reproduces Python's negative-list-index wrap.
    every_piece = jnp.pi / 2.0 / MULTIP_COUNT
    theta = jnp.arctan(preference[:, 1] / (preference[:, 0] + 0.01))
    idx = jnp.floor(theta / every_piece).astype(jnp.int32) % MULTIP_COUNT
    onehot = jax.nn.one_hot(idx, MULTIP_COUNT, dtype=jnp.float32)          # (B, M)
    side = jnp.concatenate([preference.astype(jnp.float32), onehot], axis=1)  # (B, 6)

    Bp, tile_b = _choose_tiling(B)
    if Bp != B:   # at most 7 rows in the common case (sublane alignment only)
        obs = jnp.pad(obs, ((0, Bp - B), (0, 0)))
        side = jnp.pad(side, ((0, Bp - B), (0, 0)))
    grid = (Bp // tile_b,)

    def batch_spec(width):
        return pl.BlockSpec((tile_b, width), lambda i: (i, 0))

    def const_spec(arr):   # weights resident across the grid
        return pl.BlockSpec(arr.shape, lambda i: (0,) * arr.ndim)

    out = pl.pallas_call(
        multip_net_kernel,
        out_shape=jax.ShapeDtypeStruct((Bp, OUT_LANES), jnp.float32),
        grid=grid,
        in_specs=[
            batch_spec(MAP_DIM),                 # obs (bf16)
            batch_spec(SIDE_DIM),                # packed preference + onehot
            const_spec(fused["wf"]), const_spec(fused["bf"]),
            const_spec(fused["w1"]), const_spec(fused["w1p"]), const_spec(fused["b1"]),
            const_spec(fused["w2"]), const_spec(fused["ba2"]), const_spec(fused["bc2"]),
        ],
        out_specs=pl.BlockSpec((tile_b, OUT_LANES), lambda i: (i, 0)),
        compiler_params=pltpu.CompilerParams(
            dimension_semantics=("parallel",),
            vmem_limit_bytes=64 * 1024 * 1024),
    )(
        obs, side,
        fused["wf"], fused["bf"],
        fused["w1"], fused["w1p"], fused["b1"],
        fused["w2"], fused["ba2"], fused["bc2"],
    )

    policy = out[:B, 0:ACTION_SPACE]
    value = out[:B, ACTION_SPACE:ACTION_SPACE + PREFERENCE_DIM]
    return policy, value


# ----- Deterministic parameter initialization (PyTorch-style uniform) ---------
def init_params(key):
    def linear(key, fan_in, fan_out):
        kw, kb = jax.random.split(key)
        bound = 1.0 / jnp.sqrt(fan_in)
        w = jax.random.uniform(kw, (fan_in, fan_out), jnp.float32, -bound, bound)
        b = jax.random.uniform(kb, (1, fan_out), jnp.float32, -bound, bound)
        return w, b

    keys = jax.random.split(key, 2 + 2 * MULTIP_COUNT + 2)
    k = iter(keys)

    wf, bf = linear(next(k), MAP_DIM, FEATURE_COUNT)

    cat_dim = FEATURE_COUNT + PREFERENCE_DIM
    wa1f, wa1p, ba1, wa2, ba2 = [], [], [], [], []
    for _ in range(MULTIP_COUNT):
        w1, b1 = linear(next(k), cat_dim, FEATURE_COUNT)
        w2, b2 = linear(next(k), FEATURE_COUNT, ACTION_SPACE)
        wa1f.append(w1[:FEATURE_COUNT])          # (128, 128)
        wa1p.append(w1[FEATURE_COUNT:])          # (2, 128)
        ba1.append(b1)                           # (1, 128)
        wa2.append(w2)                           # (128, A)
        ba2.append(b2)                           # (1, A)

    wc1, bc1 = linear(next(k), cat_dim, FEATURE_COUNT)
    wc2, bc2 = linear(next(k), FEATURE_COUNT, PREFERENCE_DIM)

    return {
        "wf": wf, "bf": bf,
        "wa1f": jnp.stack(wa1f), "wa1p": jnp.stack(wa1p), "ba1": jnp.stack(ba1),
        "wa2": jnp.stack(wa2), "ba2": jnp.stack(ba2),
        "wc1f": wc1[:FEATURE_COUNT], "wc1p": wc1[FEATURE_COUNT:], "bc1": bc1,
        "wc2": wc2, "bc2": bc2,
    }


# ----- Pure-JAX reference (semantics check, matching bf16-MXU precision) -------
def reference_forward(obs, preference, params):
    def mm(x, w):  # same precision policy as the kernel: bf16 inputs, f32 accum
        return jnp.dot(x.astype(jnp.bfloat16), w.astype(jnp.bfloat16),
                       preferred_element_type=jnp.float32)

    feat = _leaky_relu(mm(obs, params["wf"]) + params["bf"])
    every_piece = jnp.pi / 2.0 / MULTIP_COUNT
    idx = (
        jnp.floor(jnp.arctan(preference[:, 1] / (preference[:, 0] + 0.01)) / every_piece)
        .astype(jnp.int32) % MULTIP_COUNT
    )
    pols = []
    for b in range(obs.shape[0]):
        m = int(idx[b])
        pref_b = preference[b:b + 1]
        pref_part = (pref_b[:, 0:1] * params["wa1p"][m][0:1, :]
                     + pref_b[:, 1:2] * params["wa1p"][m][1:2, :])
        h = _leaky_relu(mm(feat[b:b + 1], params["wa1f"][m]) + pref_part + params["ba1"][m])
        pols.append(mm(h, params["wa2"][m]) + params["ba2"][m])
    policy = jnp.concatenate(pols, axis=0)

    pref_part_c = (preference[:, 0:1] * params["wc1p"][0:1, :]
                   + preference[:, 1:2] * params["wc1p"][1:2, :])
    hc = _leaky_relu(mm(feat, params["wc1f"]) + pref_part_c + params["bc1"])
    value = mm(hc, params["wc2"]) + params["bc2"]
    return policy, value


if __name__ == "__main__":
    key = jax.random.PRNGKey(0)
    k_obs, k_pref, k_params = jax.random.split(key, 3)

    B = 4
    obs_f32 = jax.random.normal(k_obs, (B, MAP_DIM), jnp.float32)
    obs_bf16 = obs_f32.astype(jnp.bfloat16)   # producer-side bf16 stream
    # positive preference weights (like envelope-Q preference vectors)
    preference = jax.random.uniform(k_pref, (B, PREFERENCE_DIM), jnp.float32, 0.0, 1.0)

    params = init_params(k_params)
    fused = prepare_params(params)

    policy, value = multip_net_forward(obs_bf16, preference, fused)
    jax.block_until_ready((policy, value))

    ref_policy, ref_value = reference_forward(obs_f32, preference, params)
    assert policy.shape == (B, ACTION_SPACE) and value.shape == (B, PREFERENCE_DIM)
    assert jnp.allclose(policy, ref_policy, atol=2e-3, rtol=2e-3), (
        jnp.max(jnp.abs(policy - ref_policy)))
    assert jnp.allclose(value, ref_value, atol=2e-3, rtol=2e-3), (
        jnp.max(jnp.abs(value - ref_value)))

    print("KERNEL_OK")
</pallas_src>

<mosaic_0001>
module attributes {stable_mosaic.version = 11 : i64} {
  func.func @multip_net_kernel(%arg0: i32, %arg1: memref<8x256xbf16, #tpu.memory_space<vmem>>, %arg2: memref<8x6xf32, #tpu.memory_space<vmem>>, %arg3: memref<256x128xbf16, #tpu.memory_space<vmem>>, %arg4: memref<1x128xf32, #tpu.memory_space<vmem>>, %arg5: memref<128x640xbf16, #tpu.memory_space<vmem>>, %arg6: memref<2x640xf32, #tpu.memory_space<vmem>>, %arg7: memref<1x640xf32, #tpu.memory_space<vmem>>, %arg8: memref<640x16xbf16, #tpu.memory_space<vmem>>, %arg9: memref<4x16xf32, #tpu.memory_space<vmem>>, %arg10: memref<1x16xf32, #tpu.memory_space<vmem>>, %arg11: memref<8x16xf32, #tpu.memory_space<vmem>>) attributes {dimension_semantics = [#tpu.dimension_semantics<parallel>], iteration_bounds = array<i64: 1>, scalar_prefetch = 0 : i64, scratch_operands = 0 : i64, tpu.core_type = #tpu.core_type<tc>, window_params = [{transform_indices = @transform_0, window_bounds = array<i64: 8, 256>}, {transform_indices = @transform_1, window_bounds = array<i64: 8, 6>}, {pipeline_mode = #tpu.pipeline_mode<synchronous>, transform_indices = @transform_2, window_bounds = array<i64: 256, 128>}, {pipeline_mode = #tpu.pipeline_mode<synchronous>, transform_indices = @transform_3, window_bounds = array<i64: 1, 128>}, {pipeline_mode = #tpu.pipeline_mode<synchronous>, transform_indices = @transform_4, window_bounds = array<i64: 128, 640>}, {pipeline_mode = #tpu.pipeline_mode<synchronous>, transform_indices = @transform_5, window_bounds = array<i64: 2, 640>}, {pipeline_mode = #tpu.pipeline_mode<synchronous>, transform_indices = @transform_6, window_bounds = array<i64: 1, 640>}, {pipeline_mode = #tpu.pipeline_mode<synchronous>, transform_indices = @transform_7, window_bounds = array<i64: 640, 16>}, {pipeline_mode = #tpu.pipeline_mode<synchronous>, transform_indices = @transform_8, window_bounds = array<i64: 4, 16>}, {pipeline_mode = #tpu.pipeline_mode<synchronous>, transform_indices = @transform_9, window_bounds = array<i64: 1, 16>}, {transform_indices = @transform_10, window_bounds = array<i64: 8, 16>}]} {
    %c0 = arith.constant 0 : index
    %c0_0 = arith.constant 0 : index
    %0 = vector.load %arg1[%c0, %c0_0] : memref<8x256xbf16, #tpu.memory_space<vmem>>, vector<8x256xbf16>
    %c0_1 = arith.constant 0 : index
    %c0_2 = arith.constant 0 : index
    %1 = vector.load %arg2[%c0_1, %c0_2] : memref<8x6xf32, #tpu.memory_space<vmem>>, vector<8x6xf32>
    %c0_3 = arith.constant 0 : index
    %c0_4 = arith.constant 0 : index
    %2 = vector.load %arg3[%c0_3, %c0_4] : memref<256x128xbf16, #tpu.memory_space<vmem>>, vector<256x128xbf16>
    %cst = arith.constant dense<0.000000e+00> : vector<8x128xf32>
    %3 = tpu.matmul %0, %2, %cst {dimension_numbers = #tpu.dot_dimension_numbers<[1], [0], [0], [1], [0, 0, 1, 1], [], []>} : vector<8x256xbf16>, vector<256x128xbf16>, vector<8x128xf32> -> vector<8x128xf32>
    %c0_5 = arith.constant 0 : index
    %c0_6 = arith.constant 0 : index
    %4 = vector.load %arg4[%c0_5, %c0_6] : memref<1x128xf32, #tpu.memory_space<vmem>>, vector<1x128xf32>
    %5 = vector.broadcast %4 : vector<1x128xf32> to vector<8x128xf32>
    %6 = arith.addf %3, %5 : vector<8x128xf32>
    %cst_7 = arith.constant 0.000000e+00 : f32
    %7 = vector.broadcast %cst_7 : f32 to vector<8x128xf32>
    %8 = arith.cmpf oge, %6, %7 : vector<8x128xf32>
    %cst_8 = arith.constant 0.00999999977 : f32
    %9 = vector.broadcast %cst_8 : f32 to vector<8x128xf32>
    %10 = arith.mulf %9, %6 : vector<8x128xf32>
    %11 = arith.select %8, %6, %10 : vector<8x128xi1>, vector<8x128xf32>
    %12 = arith.truncf %11 : vector<8x128xf32> to vector<8x128xbf16>
    %c0_9 = arith.constant 0 : index
    %c0_10 = arith.constant 0 : index
    %13 = vector.load %arg5[%c0_9, %c0_10] : memref<128x640xbf16, #tpu.memory_space<vmem>>, vector<128x640xbf16>
    %cst_11 = arith.constant dense<0.000000e+00> : vector<8x640xf32>
    %14 = tpu.matmul %12, %13, %cst_11 {dimension_numbers = #tpu.dot_dimension_numbers<[1], [0], [0], [1], [0, 0, 1, 1], [], []>} : vector<8x128xbf16>, vector<128x640xbf16>, vector<8x640xf32> -> vector<8x640xf32>
    %c0_12 = arith.constant 0 : index
    %c0_13 = arith.constant 0 : index
    %15 = vector.load %arg6[%c0_12, %c0_13] : memref<2x640xf32, #tpu.memory_space<vmem>>, vector<2x640xf32>
    %16 = vector.extract_strided_slice %1 {offsets = [0, 0], sizes = [8, 1], strides = [1, 1]} : vector<8x6xf32> to vector<8x1xf32>
    %17 = vector.extract_strided_slice %15 {offsets = [0, 0], sizes = [1, 640], strides = [1, 1]} : vector<2x640xf32> to vector<1x640xf32>
    %18 = vector.broadcast %16 : vector<8x1xf32> to vector<8x640xf32>
    %19 = vector.broadcast %17 : vector<1x640xf32> to vector<8x640xf32>
    %20 = arith.mulf %18, %19 : vector<8x640xf32>
    %21 = arith.addf %14, %20 : vector<8x640xf32>
    %22 = vector.extract_strided_slice %1 {offsets = [0, 1], sizes = [8, 1], strides = [1, 1]} : vector<8x6xf32> to vector<8x1xf32>
    %23 = vector.extract_strided_slice %15 {offsets = [1, 0], sizes = [1, 640], strides = [1, 1]} : vector<2x640xf32> to vector<1x640xf32>
    %24 = vector.broadcast %22 : vector<8x1xf32> to vector<8x640xf32>
    %25 = vector.broadcast %23 : vector<1x640xf32> to vector<8x640xf32>
    %26 = arith.mulf %24, %25 : vector<8x640xf32>
    %27 = arith.addf %21, %26 : vector<8x640xf32>
    %c0_14 = arith.constant 0 : index
    %c0_15 = arith.constant 0 : index
    %28 = vector.load %arg7[%c0_14, %c0_15] : memref<1x640xf32, #tpu.memory_space<vmem>>, vector<1x640xf32>
    %29 = vector.broadcast %28 : vector<1x640xf32> to vector<8x640xf32>
    %30 = arith.addf %27, %29 : vector<8x640xf32>
    %cst_16 = arith.constant 0.000000e+00 : f32
    %31 = vector.broadcast %cst_16 : f32 to vector<8x640xf32>
    %32 = arith.cmpf oge, %30, %31 : vector<8x640xf32>
    %cst_17 = arith.constant 0.00999999977 : f32
    %33 = vector.broadcast %cst_17 : f32 to vector<8x640xf32>
    %34 = arith.mulf %33, %30 : vector<8x640xf32>
    %35 = arith.select %32, %30, %34 : vector<8x640xi1>, vector<8x640xf32>
    %36 = arith.truncf %35 : vector<8x640xf32> to vector<8x640xbf16>
    %37 = vector.extract_strided_slice %36 {offsets = [0, 512], sizes = [8, 128], strides = [1, 1]} : vector<8x640xbf16> to vector<8x128xbf16>
    %c512 = arith.constant 512 : index
    %c0_18 = arith.constant 0 : index
    %38 = vector.load %arg8[%c512, %c0_18] : memref<640x16xbf16, #tpu.memory_space<vmem>>, vector<128x16xbf16>
    %cst_19 = arith.constant dense<0.000000e+00> : vector<8x16xf32>
    %39 = tpu.matmul %37, %38, %cst_19 {dimension_numbers = #tpu.dot_dimension_numbers<[1], [0], [0], [1], [0, 0, 1, 1], [], []>} : vector<8x128xbf16>, vector<128x16xbf16>, vector<8x16xf32> -> vector<8x16xf32>
    %c0_20 = arith.constant 0 : index
    %c0_21 = arith.constant 0 : index
    %40 = vector.load %arg10[%c0_20, %c0_21] : memref<1x16xf32, #tpu.memory_space<vmem>>, vector<1x16xf32>
    %41 = vector.broadcast %40 : vector<1x16xf32> to vector<8x16xf32>
    %42 = arith.addf %39, %41 : vector<8x16xf32>
    %43 = vector.extract_strided_slice %36 {offsets = [0, 0], sizes = [8, 128], strides = [1, 1]} : vector<8x640xbf16> to vector<8x128xbf16>
    %c0_22 = arith.constant 0 : index
    %c0_23 = arith.constant 0 : index
    %44 = vector.load %arg8[%c0_22, %c0_23] : memref<640x16xbf16, #tpu.memory_space<vmem>>, vector<128x16xbf16>
    %cst_24 = arith.constant dense<0.000000e+00> : vector<8x16xf32>
    %45 = tpu.matmul %43, %44, %cst_24 {dimension_numbers = #tpu.dot_dimension_numbers<[1], [0], [0], [1], [0, 0, 1, 1], [], []>} : vector<8x128xbf16>, vector<128x16xbf16>, vector<8x16xf32> -> vector<8x16xf32>
    %46 = vector.extract_strided_slice %1 {offsets = [0, 2], sizes = [8, 1], strides = [1, 1]} : vector<8x6xf32> to vector<8x1xf32>
    %c0_25 = arith.constant 0 : index
    %c0_26 = arith.constant 0 : index
    %47 = vector.load %arg9[%c0_25, %c0_26] : memref<4x16xf32, #tpu.memory_space<vmem>>, vector<1x16xf32>
    %48 = vector.broadcast %47 : vector<1x16xf32> to vector<8x16xf32>
    %49 = arith.addf %45, %48 : vector<8x16xf32>
    %50 = vector.broadcast %46 : vector<8x1xf32> to vector<8x16xf32>
    %51 = arith.mulf %50, %49 : vector<8x16xf32>
    %52 = arith.addf %42, %51 : vector<8x16xf32>
    %53 = vector.extract_strided_slice %36 {offsets = [0, 128], sizes = [8, 128], strides = [1, 1]} : vector<8x640xbf16> to vector<8x128xbf16>
    %c128 = arith.constant 128 : index
    %c0_27 = arith.constant 0 : index
    %54 = vector.load %arg8[%c128, %c0_27] : memref<640x16xbf16, #tpu.memory_space<vmem>>, vector<128x16xbf16>
    %cst_28 = arith.constant dense<0.000000e+00> : vector<8x16xf32>
    %55 = tpu.matmul %53, %54, %cst_28 {dimension_numbers = #tpu.dot_dimension_numbers<[1], [0], [0], [1], [0, 0, 1, 1], [], []>} : vector<8x128xbf16>, vector<128x16xbf16>, vector<8x16xf32> -> vector<8x16xf32>
    %56 = vector.extract_strided_slice %1 {offsets = [0, 3], sizes = [8, 1], strides = [1, 1]} : vector<8x6xf32> to vector<8x1xf32>
    %c1 = arith.constant 1 : index
    %c0_29 = arith.constant 0 : index
    %57 = vector.load %arg9[%c1, %c0_29] : memref<4x16xf32, #tpu.memory_space<vmem>>, vector<1x16xf32>
    %58 = vector.broadcast %57 : vector<1x16xf32> to vector<8x16xf32>
    %59 = arith.addf %55, %58 : vector<8x16xf32>
    %60 = vector.broadcast %56 : vector<8x1xf32> to vector<8x16xf32>
    %61 = arith.mulf %60, %59 : vector<8x16xf32>
    %62 = arith.addf %52, %61 : vector<8x16xf32>
    %63 = vector.extract_strided_slice %36 {offsets = [0, 256], sizes = [8, 128], strides = [1, 1]} : vector<8x640xbf16> to vector<8x128xbf16>
    %c256 = arith.constant 256 : index
    %c0_30 = arith.constant 0 : index
    %64 = vector.load %arg8[%c256, %c0_30] : memref<640x16xbf16, #tpu.memory_space<vmem>>, vector<128x16xbf16>
    %cst_31 = arith.constant dense<0.000000e+00> : vector<8x16xf32>
    %65 = tpu.matmul %63, %64, %cst_31 {dimension_numbers = #tpu.dot_dimension_numbers<[1], [0], [0], [1], [0, 0, 1, 1], [], []>} : vector<8x128xbf16>, vector<128x16xbf16>, vector<8x16xf32> -> vector<8x16xf32>
    %66 = vector.extract_strided_slice %1 {offsets = [0, 4], sizes = [8, 1], strides = [1, 1]} : vector<8x6xf32> to vector<8x1xf32>
    %c2 = arith.constant 2 : index
    %c0_32 = arith.constant 0 : index
    %67 = vector.load %arg9[%c2, %c0_32] : memref<4x16xf32, #tpu.memory_space<vmem>>, vector<1x16xf32>
    %68 = vector.broadcast %67 : vector<1x16xf32> to vector<8x16xf32>
    %69 = arith.addf %65, %68 : vector<8x16xf32>
    %70 = vector.broadcast %66 : vector<8x1xf32> to vector<8x16xf32>
    %71 = arith.mulf %70, %69 : vector<8x16xf32>
    %72 = arith.addf %62, %71 : vector<8x16xf32>
    %73 = vector.extract_strided_slice %36 {offsets = [0, 384], sizes = [8, 128], strides = [1, 1]} : vector<8x640xbf16> to vector<8x128xbf16>
    %c384 = arith.constant 384 : index
    %c0_33 = arith.constant 0 : index
    %74 = vector.load %arg8[%c384, %c0_33] : memref<640x16xbf16, #tpu.memory_space<vmem>>, vector<128x16xbf16>
    %cst_34 = arith.constant dense<0.000000e+00> : vector<8x16xf32>
    %75 = tpu.matmul %73, %74, %cst_34 {dimension_numbers = #tpu.dot_dimension_numbers<[1], [0], [0], [1], [0, 0, 1, 1], [], []>} : vector<8x128xbf16>, vector<128x16xbf16>, vector<8x16xf32> -> vector<8x16xf32>
    %76 = vector.extract_strided_slice %1 {offsets = [0, 5], sizes = [8, 1], strides = [1, 1]} : vector<8x6xf32> to vector<8x1xf32>
    %c3 = arith.constant 3 : index
    %c0_35 = arith.constant 0 : index
    %77 = vector.load %arg9[%c3, %c0_35] : memref<4x16xf32, #tpu.memory_space<vmem>>, vector<1x16xf32>
    %78 = vector.broadcast %77 : vector<1x16xf32> to vector<8x16xf32>
    %79 = arith.addf %75, %78 : vector<8x16xf32>
    %80 = vector.broadcast %76 : vector<8x1xf32> to vector<8x16xf32>
    %81 = arith.mulf %80, %79 : vector<8x16xf32>
    %82 = arith.addf %72, %81 : vector<8x16xf32>
    %c0_36 = arith.constant 0 : index
    %c0_37 = arith.constant 0 : index
    %83 = vector.load %arg11[%c0_36, %c0_37] : memref<8x16xf32, #tpu.memory_space<vmem>>, vector<8x16xf32>
    tpu.vector_store %arg11[%c0_36, %c0_37], %82 {strides = array<i32>} : memref<8x16xf32, #tpu.memory_space<vmem>>, vector<8x16xf32>,
    return
  }
  func.func @transform_0(%arg0: i32) -> (i32, i32) {
    %c0_i32 = arith.constant 0 : i32
    %c0_i32_0 = arith.constant 0 : i32
    return %arg0, %c0_i32 : i32, i32
  }
  func.func @transform_1(%arg0: i32) -> (i32, i32) {
    %c0_i32 = arith.constant 0 : i32
    %c0_i32_0 = arith.constant 0 : i32
    return %arg0, %c0_i32 : i32, i32
  }
  func.func @transform_2(%arg0: i32) -> (i32, i32) {
    %c0_i32 = arith.constant 0 : i32
    %c0_i32_0 = arith.constant 0 : i32
    %c0_i32_1 = arith.constant 0 : i32
    return %c0_i32, %c0_i32_0 : i32, i32
  }
  func.func @transform_3(%arg0: i32) -> (i32, i32) {
    %c0_i32 = arith.constant 0 : i32
    %c0_i32_0 = arith.constant 0 : i32
    %c0_i32_1 = arith.constant 0 : i32
    return %c0_i32, %c0_i32_0 : i32, i32
  }
  func.func @transform_4(%arg0: i32) -> (i32, i32) {
    %c0_i32 = arith.constant 0 : i32
    %c0_i32_0 = arith.constant 0 : i32
    %c0_i32_1 = arith.constant 0 : i32
    return %c0_i32, %c0_i32_0 : i32, i32
  }
  func.func @transform_5(%arg0: i32) -> (i32, i32) {
    %c0_i32 = arith.constant 0 : i32
    %c0_i32_0 = arith.constant 0 : i32
    %c0_i32_1 = arith.constant 0 : i32
    return %c0_i32, %c0_i32_0 : i32, i32
  }
  func.func @transform_6(%arg0: i32) -> (i32, i32) {
    %c0_i32 = arith.constant 0 : i32
    %c0_i32_0 = arith.constant 0 : i32
    %c0_i32_1 = arith.constant 0 : i32
    return %c0_i32, %c0_i32_0 : i32, i32
  }
  func.func @transform_7(%arg0: i32) -> (i32, i32) {
    %c0_i32 = arith.constant 0 : i32
    %c0_i32_0 = arith.constant 0 : i32
    %c0_i32_1 = arith.constant 0 : i32
    return %c0_i32, %c0_i32_0 : i32, i32
  }
  func.func @transform_8(%arg0: i32) -> (i32, i32) {
    %c0_i32 = arith.constant 0 : i32
    %c0_i32_0 = arith.constant 0 : i32
    %c0_i32_1 = arith.constant 0 : i32
    return %c0_i32, %c0_i32_0 : i32, i32
  }
  func.func @transform_9(%arg0: i32) -> (i32, i32) {
    %c0_i32 = arith.constant 0 : i32
    %c0_i32_0 = arith.constant 0 : i32
    %c0_i32_1 = arith.constant 0 : i32
    return %c0_i32, %c0_i32_0 : i32, i32
  }
  func.func @transform_10(%arg0: i32) -> (i32, i32) {
    %c0_i32 = arith.constant 0 : i32
    %c0_i32_0 = arith.constant 0 : i32
    return %arg0, %c0_i32 : i32, i32
  }
}

</mosaic_0001>

<llo_original>
// kernel: multip_net_forward.1
$region0: #{multip_net_forward.1}
  #allocation0 [shape = 'u32[]', space=smem, size = 0x4, offset = 0x4, fixed_abs, tag = 'smem constant byte address 0x4 - core index']
  #allocation1 [shape = 'u32[144,128]{1,0:T(1,128)}', space=vmem, size = 0x12000, scoped, tag = 'internal scratch']
  %s0 = inlined_call_operand.hbm [shape: bf16[8,256], index: 0, kind: input, shape index: {}]
  %s1 = inlined_call_operand.hbm [shape: f32[8,6], index: 1, kind: input, shape index: {}]
  %s2 = inlined_call_operand.hbm [shape: bf16[256,128], index: 2, kind: input, shape index: {}]
  %s3 = inlined_call_operand.hbm [shape: f32[1,128], index: 3, kind: input, shape index: {}]
  %s4 = inlined_call_operand.hbm [shape: bf16[128,640], index: 4, kind: input, shape index: {}]
  %s5 = inlined_call_operand.hbm [shape: f32[2,640], index: 5, kind: input, shape index: {}]
  %s6 = inlined_call_operand.hbm [shape: f32[1,640], index: 6, kind: input, shape index: {}]
  %s7 = inlined_call_operand.hbm [shape: bf16[640,16], index: 7, kind: input, shape index: {}]
  %s8 = inlined_call_operand.hbm [shape: f32[4,16], index: 8, kind: input, shape index: {}]
  %s9 = inlined_call_operand.hbm [shape: f32[1,16], index: 9, kind: input, shape index: {}]
  %s10 = inlined_call_operand.hbm [shape: f32[8,16], index: 10, kind: output, shape index: {}]
  %s11 = sld [smem:[#allocation0]]
  $region90: #{multip_net_forward.1} parent=0
    _
  %s13 = ssub.s32 1, %s11
  %s14 = scalar_select 0, %s13, %s11
  $region1: #{multip_net_forward.1} parent=0
    #allocation2 [shape = 'u8[4096]{0}', space=vmem, size = 0x1000, scoped, tag = 'input window, operand 0, single buffered']
    #allocation3 [shape = 's32[1]{0}', space=sflag, size = 0x4, scoped, tag = 'scoped memory for multip_net_forward.1']
    #allocation4 [shape = 's32[1]{0}', space=sflag, size = 0x4, scoped, tag = 'scoped memory for multip_net_forward.1']
    #allocation5 [shape = 'u8[4096]{0}', space=vmem, size = 0x1000, scoped, tag = 'input window, operand 1, single buffered']
    #allocation6 [shape = 's32[1]{0}', space=sflag, size = 0x4, scoped, tag = 'scoped memory for multip_net_forward.1']
    #allocation7 [shape = 'u8[65536]{0}', space=vmem, size = 0x10000, scoped, tag = 'input window, operand 2, single buffered']
    #allocation8 [shape = 'u8[512]{0}', space=vmem, size = 0x400, scoped, tag = 'input window, operand 3, single buffered']
    #allocation9 [shape = 's32[1]{0}', space=sflag, size = 0x4, scoped, tag = 'scoped memory for multip_net_forward.1']
    #allocation10 [shape = 'u8[163840]{0}', space=vmem, size = 0x28000, scoped, tag = 'input window, operand 4, single buffered']
    #allocation11 [shape = 'u8[5120]{0}', space=vmem, size = 0x1400, scoped, tag = 'input window, operand 5, single buffered']
    #allocation12 [shape = 's32[1]{0}', space=sflag, size = 0x4, scoped, tag = 'scoped memory for multip_net_forward.1']
    #allocation13 [shape = 'u8[2560]{0}', space=vmem, size = 0xc00, scoped, tag = 'input window, operand 6, single buffered']
    #allocation14 [shape = 'u8[163840]{0}', space=vmem, size = 0x28000, scoped, tag = 'input window, operand 7, single buffered']
    #allocation15 [shape = 's32[1]{0}', space=sflag, size = 0x4, scoped, tag = 'scoped memory for multip_net_forward.1']
    #allocation16 [shape = 'u8[2048]{0}', space=vmem, size = 0x800, scoped, tag = 'input window, operand 8, single buffered']
    #allocation17 [shape = 'u8[512]{0}', space=vmem, size = 0x400, scoped, tag = 'input window, operand 9, single buffered']
    #allocation18 [shape = 's32[1]{0}', space=sflag, size = 0x4, scoped, tag = 'scoped memory for multip_net_forward.1']
    #allocation19 [shape = 'u8[4096]{0}', space=vmem, size = 0x1000, scoped, tag = 'output window, operand 0, single buffered']
    %15 = vsyncpa [#allocation3], 0
    %16 = vsyncpa [#allocation6], 0
    %17 = vsyncpa [#allocation9], 0
    %18 = vsyncpa [#allocation12], 0
    %19 = vsyncpa [#allocation15], 0
    %20 = vsyncpa [#allocation18], 0
    %21 = vsyncpa [#allocation4], 0
    // Predicated region
    $region2: #{multip_net_forward.1} parent=1 // pred_check
      _
    $region3: #{multip_net_forward.1} parent=1 // pred_check_branch
      %23 = sbr.rel (0) target = $region5
    $region4: #{multip_net_forward.1} parent=1 // pred_region
      %s25 = ssub.s32 128, 128
      %26 = vsyncadd [#allocation3], %s25
      %s28 = sshll.u32 [#allocation2], 4
      %s29 = int_to_ptr.vmem [resolvable:$true] %s28
      %31 = dma.hbm_to_vmem [thread:$0]  %s0, 128, %s29, [#allocation3]
    $region5: #{multip_net_forward.1} parent=1 // pred_fallthru
      _
    // Predicated region
    $region6: #{multip_net_forward.1} parent=1 // pred_check
      _
    $region7: #{multip_net_forward.1} parent=1 // pred_check_branch
      %33 = sbr.rel (0) target = $region9
    $region8: #{multip_net_forward.1} parent=1 // pred_region
      %s35 = ssub.s32 128, 128
      %36 = vsyncadd [#allocation6], %s35
      %s38 = sshll.u32 [#allocation5], 4
      %s39 = int_to_ptr.vmem [resolvable:$true] %s38
      %41 = dma.hbm_to_vmem [thread:$0]  %s1, 128, %s39, [#allocation6]
    $region9: #{multip_net_forward.1} parent=1 // pred_fallthru
      _
    // Predicated region
    $region10: #{multip_net_forward.1} parent=1 // pred_check
      _
    $region11: #{multip_net_forward.1} parent=1 // pred_check_branch
      %43 = sbr.rel (0) target = $region13
    $region12: #{multip_net_forward.1} parent=1 // pred_region
      %s45 = ssub.s32 2048, 2048
      %46 = vsyncadd [#allocation6], %s45
      %s47 = sshll.u32 [#allocation7], 4
      %s48 = int_to_ptr.vmem [resolvable:$true] %s47
      %53 = dma.hbm_to_vmem [thread:$0]  %s2, 2048, %s48, [#allocation6], 64, 64, 4
    $region13: #{multip_net_forward.1} parent=1 // pred_fallthru
      _
    // Predicated region
    $region14: #{multip_net_forward.1} parent=1 // pred_check
      _
    $region15: #{multip_net_forward.1} parent=1 // pred_check_branch
      %55 = sbr.rel (0) target = $region17
    $region16: #{multip_net_forward.1} parent=1 // pred_region
      %s57 = ssub.s32 16, 16
      %58 = vsyncadd [#allocation9], %s57
      %s60 = sshll.u32 [#allocation8], 4
      %s61 = int_to_ptr.vmem [resolvable:$true] %s60
      %63 = dma.hbm_to_vmem [thread:$0]  %s3, 16, %s61, [#allocation9]
    $region17: #{multip_net_forward.1} parent=1 // pred_fallthru
      _
    // Predicated region
    $region18: #{multip_net_forward.1} parent=1 // pred_check
      _
    $region19: #{multip_net_forward.1} parent=1 // pred_check_branch
      %65 = sbr.rel (0) target = $region21
    $region20: #{multip_net_forward.1} parent=1 // pred_region
      %s67 = ssub.s32 5120, 5120
      %68 = vsyncadd [#allocation9], %s67
      %s69 = sshll.u32 [#allocation10], 4
      %s70 = int_to_ptr.vmem [resolvable:$true] %s69
      %75 = dma.hbm_to_vmem [thread:$0]  %s4, 5120, %s70, [#allocation9], 320, 320, 20
    $region21: #{multip_net_forward.1} parent=1 // pred_fallthru
      _
    // Predicated region
    $region22: #{multip_net_forward.1} parent=1 // pred_check
      _
    $region23: #{multip_net_forward.1} parent=1 // pred_check_branch
      %77 = sbr.rel (0) target = $region25
    $region24: #{multip_net_forward.1} parent=1 // pred_region
      %s79 = ssub.s32 160, 160
      %80 = vsyncadd [#allocation12], %s79
      %s82 = sshll.u32 [#allocation11], 4
      %s83 = int_to_ptr.vmem [resolvable:$true] %s82
      %85 = dma.hbm_to_vmem [thread:$0]  %s5, 160, %s83, [#allocation12]
    $region25: #{multip_net_forward.1} parent=1 // pred_fallthru
      _
    // Predicated region
    $region26: #{multip_net_forward.1} parent=1 // pred_check
      _
    $region27: #{multip_net_forward.1} parent=1 // pred_check_branch
      %87 = sbr.rel (0) target = $region29
    $region28: #{multip_net_forward.1} parent=1 // pred_region
      %s89 = ssub.s32 80, 80
      %90 = vsyncadd [#allocation12], %s89
      %s92 = sshll.u32 [#allocation13], 4
      %s93 = int_to_ptr.vmem [resolvable:$true] %s92
      %95 = dma.hbm_to_vmem [thread:$0]  %s6, 80, %s93, [#allocation12]
    $region29: #{multip_net_forward.1} parent=1 // pred_fallthru
      _
    // Predicated region
    $region30: #{multip_net_forward.1} parent=1 // pred_check
      _
    $region31: #{multip_net_forward.1} parent=1 // pred_check_branch
      %97 = sbr.rel (0) target = $region33
    $region32: #{multip_net_forward.1} parent=1 // pred_region
      %s99 = ssub.s32 5120, 5120
      %100 = vsyncadd [#allocation15], %s99
      %s101 = sshll.u32 [#allocation14], 4
      %s102 = int_to_ptr.vmem [resolvable:$true] %s101
      %107 = dma.hbm_to_vmem [thread:$0]  %s7, 5120, %s102, [#allocation15], 64, 64, 4
    $region33: #{multip_net_forward.1} parent=1 // pred_fallthru
      _
    // Predicated region
    $region34: #{multip_net_forward.1} parent=1 // pred_check
      _
    $region35: #{multip_net_forward.1} parent=1 // pred_check_branch
      %109 = sbr.rel (0) target = $region37
    $region36: #{multip_net_forward.1} parent=1 // pred_region
      %s111 = ssub.s32 64, 64
      %112 = vsyncadd [#allocation15], %s111
      %s114 = sshll.u32 [#allocation16], 4
      %s115 = int_to_ptr.vmem [resolvable:$true] %s114
      %117 = dma.hbm_to_vmem [thread:$0]  %s8, 64, %s115, [#allocation15]
    $region37: #{multip_net_forward.1} parent=1 // pred_fallthru
      _
    // Predicated region
    $region38: #{multip_net_forward.1} parent=1 // pred_check
      _
    $region39: #{multip_net_forward.1} parent=1 // pred_check_branch
      %119 = sbr.rel (0) target = $region41
    $region40: #{multip_net_forward.1} parent=1 // pred_region
      %s121 = ssub.s32 16, 16
      %122 = vsyncadd [#allocation18], %s121
      %s124 = sshll.u32 [#allocation17], 4
      %s125 = int_to_ptr.vmem [resolvable:$true] %s124
      %127 = dma.hbm_to_vmem [thread:$0]  %s9, 16, %s125, [#allocation18]
    $region41: #{multip_net_forward.1} parent=1 // pred_fallthru
      _
    // Predicated region
    $region42: #{multip_net_forward.1} parent=1 // pred_check
      _
    $region43: #{multip_net_forward.1} parent=1 // pred_check_branch
      %129 = sbr.rel (0) target = $region45
    $region44: #{multip_net_forward.1} parent=1 // pred_region
      %130 = dma.done [#allocation3], 128
    $region45: #{multip_net_forward.1} parent=1 // pred_fallthru
      _
    // Predicated region
    $region46: #{multip_net_forward.1} parent=1 // pred_check
      _
    $region47: #{multip_net_forward.1} parent=1 // pred_check_branch
      %132 = sbr.rel (0) target = $region49
    $region48: #{multip_net_forward.1} parent=1 // pred_region
      %133 = dma.done [#allocation6], 128
    $region49: #{multip_net_forward.1} parent=1 // pred_fallthru
      _
    // Predicated region
    $region50: #{multip_net_forward.1} parent=1 // pred_check
      _
    $region51: #{multip_net_forward.1} parent=1 // pred_check_branch
      %135 = sbr.rel (0) target = $region53
    $region52: #{multip_net_forward.1} parent=1 // pred_region
      %136 = dma.done [#allocation6], 2048
    $region53: #{multip_net_forward.1} parent=1 // pred_fallthru
      _
    // Predicated region
    $region54: #{multip_net_forward.1} parent=1 // pred_check
      _
    $region55: #{multip_net_forward.1} parent=1 // pred_check_branch
      %138 = sbr.rel (0) target = $region57
    $region56: #{multip_net_forward.1} parent=1 // pred_region
      %139 = dma.done [#allocation9], 16
    $region57: #{multip_net_forward.1} parent=1 // pred_fallthru
      _
    // Predicated region
    $region58: #{multip_net_forward.1} parent=1 // pred_check
      _
    $region59: #{multip_net_forward.1} parent=1 // pred_check_branch
      %141 = sbr.rel (0) target = $region61
    $region60: #{multip_net_forward.1} parent=1 // pred_region
      %142 = dma.done [#allocation9], 5120
    $region61: #{multip_net_forward.1} parent=1 // pred_fallthru
      _
    // Predicated region
    $region62: #{multip_net_forward.1} parent=1 // pred_check
      _
    $region63: #{multip_net_forward.1} parent=1 // pred_check_branch
      %144 = sbr.rel (0) target = $region65
    $region64: #{multip_net_forward.1} parent=1 // pred_region
      %145 = dma.done [#allocation12], 160
    $region65: #{multip_net_forward.1} parent=1 // pred_fallthru
      _
    // Predicated region
    $region66: #{multip_net_forward.1} parent=1 // pred_check
      _
    $region67: #{multip_net_forward.1} parent=1 // pred_check_branch
      %147 = sbr.rel (0) target = $region69
    $region68: #{multip_net_forward.1} parent=1 // pred_region
      %148 = dma.done [#allocation12], 80
    $region69: #{multip_net_forward.1} parent=1 // pred_fallthru
      _
    // Predicated region
    $region70: #{multip_net_forward.1} parent=1 // pred_check
      _
    $region71: #{multip_net_forward.1} parent=1 // pred_check_branch
      %150 = sbr.rel (0) target = $region73
    $region72: #{multip_net_forward.1} parent=1 // pred_region
      %151 = dma.done [#allocation15], 5120
    $region73: #{multip_net_forward.1} parent=1 // pred_fallthru
      _
    // Predicated region
    $region74: #{multip_net_forward.1} parent=1 // pred_check
      _
    $region75: #{multip_net_forward.1} parent=1 // pred_check_branch
      %153 = sbr.rel (0) target = $region77
    $region76: #{multip_net_forward.1} parent=1 // pred_region
      %154 = dma.done [#allocation15], 64
    $region77: #{multip_net_forward.1} parent=1 // pred_fallthru
      _
    // Predicated region
    $region78: #{multip_net_forward.1} parent=1 // pred_check
      _
    $region79: #{multip_net_forward.1} parent=1 // pred_check_branch
      %156 = sbr.rel (0) target = $region81
    $region80: #{multip_net_forward.1} parent=1 // pred_region
      %157 = dma.done [#allocation18], 16
    $region81: #{multip_net_forward.1} parent=1 // pred_fallthru
      _
    %v159 = vld [vmem:[#allocation2] sm:$0xff]
    %v160 = vld [vmem:[#allocation5] sm:$0xff]
    %v161 = vld [vmem:[#allocation7] sm:$0xf]
    %v162 = vld [vmem:[#allocation7 + $0x4] sm:$0xf]
    %v163 = vld [vmem:[#allocation7 + $0x8] sm:$0xf]
    %v164 = vld [vmem:[#allocation7 + $0xc] sm:$0xf]
    %v165 = vld [vmem:[#allocation7 + $0x10] sm:$0xf]
    %v166 = vld [vmem:[#allocation7 + $0x14] sm:$0xf]
    %v167 = vld [vmem:[#allocation7 + $0x18] sm:$0xf]
    %v168 = vld [vmem:[#allocation7 + $0x1c] sm:$0xf]
    %v169 = vld [vmem:[#allocation7 + $0x20] sm:$0xf]
    %v170 = vld [vmem:[#allocation7 + $0x24] sm:$0xf]
    %v171 = vld [vmem:[#allocation7 + $0x28] sm:$0xf]
    %v172 = vld [vmem:[#allocation7 + $0x2c] sm:$0xf]
    %v173 = vld [vmem:[#allocation7 + $0x30] sm:$0xf]
    %v174 = vld [vmem:[#allocation7 + $0x34] sm:$0xf]
    %v175 = vld [vmem:[#allocation7 + $0x38] sm:$0xf]
    %v176 = vld [vmem:[#allocation7 + $0x3c] sm:$0xf]
    %v177 = vld [vmem:[#allocation7 + $0x40] sm:$0xf]
    %v178 = vld [vmem:[#allocation7 + $0x44] sm:$0xf]
    %v179 = vld [vmem:[#allocation7 + $0x48] sm:$0xf]
    %v180 = vld [vmem:[#allocation7 + $0x4c] sm:$0xf]
    %v181 = vld [vmem:[#allocation7 + $0x50] sm:$0xf]
    %v182 = vld [vmem:[#allocation7 + $0x54] sm:$0xf]
    %v183 = vld [vmem:[#allocation7 + $0x58] sm:$0xf]
    %v184 = vld [vmem:[#allocation7 + $0x5c] sm:$0xf]
    %v185 = vld [vmem:[#allocation7 + $0x60] sm:$0xf]
    %v186 = vld [vmem:[#allocation7 + $0x64] sm:$0xf]
    %v187 = vld [vmem:[#allocation7 + $0x68] sm:$0xf]
    %v188 = vld [vmem:[#allocation7 + $0x6c] sm:$0xf]
    %v189 = vld [vmem:[#allocation7 + $0x70] sm:$0xf]
    %v190 = vld [vmem:[#allocation7 + $0x74] sm:$0xf]
    %v191 = vld [vmem:[#allocation7 + $0x78] sm:$0xf]
    %v192 = vld [vmem:[#allocation7 + $0x7c] sm:$0xf]
    %v193 = vld [vmem:[#allocation8] sm:$0x1]
    %v195 = vlaneseq
    %v196 = vshrl.u32 %v195, 7
    %v197 = vsub.s32 0, %v196
    %v198 = vrot.slane %v193, %v197
    %v201 = vunpack.c.l.b16 %v159
    %v202 = vunpack.c.h.b16 %v159
    %v203 = vpack.c.b16 %v201, %v201
    %v204 = vpack.c.b16 %v202, %v202
    %v239 = vunpack.c.l.b16 %v161
    %v240 = vunpack.c.l.b16 %v162
    %v241 = vunpack.c.l.b16 %v163
    %v242 = vunpack.c.l.b16 %v164
    %v243 = vunpack.c.l.b16 %v165
    %v244 = vunpack.c.l.b16 %v166
    %v245 = vunpack.c.l.b16 %v167
    %v246 = vunpack.c.l.b16 %v168
    %v247 = vunpack.c.l.b16 %v169
    %v248 = vunpack.c.l.b16 %v170
    %v249 = vunpack.c.l.b16 %v171
    %v250 = vunpack.c.l.b16 %v172
    %v251 = vunpack.c.l.b16 %v173
    %v252 = vunpack.c.l.b16 %v174
    %v253 = vunpack.c.l.b16 %v175
    %v254 = vunpack.c.l.b16 %v176
    %v255 = vunpack.c.l.b16 %v177
    %v256 = vunpack.c.l.b16 %v178
    %v257 = vunpack.c.l.b16 %v179
    %v258 = vunpack.c.l.b16 %v180
    %v259 = vunpack.c.l.b16 %v181
    %v260 = vunpack.c.l.b16 %v182
    %v261 = vunpack.c.l.b16 %v183
    %v262 = vunpack.c.l.b16 %v184
    %v263 = vunpack.c.l.b16 %v185
    %v264 = vunpack.c.l.b16 %v186
    %v265 = vunpack.c.l.b16 %v187
    %v266 = vunpack.c.l.b16 %v188
    %v267 = vunpack.c.l.b16 %v189
    %v268 = vunpack.c.l.b16 %v190
    %v269 = vunpack.c.l.b16 %v191
    %v270 = vunpack.c.l.b16 %v192
    %v271 = vpack.c.b16 %v240, %v239
    %v272 = vpack.c.b16 %v242, %v241
    %v273 = vpack.c.b16 %v244, %v243
    %v274 = vpack.c.b16 %v246, %v245
    %v275 = vpack.c.b16 %v248, %v247
    %v276 = vpack.c.b16 %v250, %v249
    %v277 = vpack.c.b16 %v252, %v251
    %v278 = vpack.c.b16 %v254, %v253
    %v279 = vpack.c.b16 %v256, %v255
    %v280 = vpack.c.b16 %v258, %v257
    %v281 = vpack.c.b16 %v260, %v259
    %v282 = vpack.c.b16 %v262, %v261
    %v283 = vpack.c.b16 %v264, %v263
    %v284 = vpack.c.b16 %v266, %v265
    %v285 = vpack.c.b16 %v268, %v267
    %v286 = vpack.c.b16 %v270, %v269
    %303 = vmatprep.subr.bf16.mxu0 0
    %304 = vmatpush1.bf16.msra.mxu0 %v271
    %305 = vmatprep.subr.bf16.mxu0 0
    %306 = vmatpush1.bf16.msra.mxu0 %v272
    %307 = vmatprep.subr.bf16.mxu0 0
    %308 = vmatpush1.bf16.msra.mxu0 %v273
    %309 = vmatprep.subr.bf16.mxu0 0
    %310 = vmatpush1.bf16.msra.mxu0 %v274
    %311 = vmatprep.subr.bf16.mxu0 0
    %312 = vmatpush1.bf16.msra.mxu0 %v275
    %313 = vmatprep.subr.bf16.mxu0 0
    %314 = vmatpush1.bf16.msra.mxu0 %v276
    %315 = vmatprep.subr.bf16.mxu0 0
    %316 = vmatpush1.bf16.msra.mxu0 %v277
    %317 = vmatprep.subr.bf16.mxu0 0
    %318 = vmatpush1.bf16.msra.mxu0 %v278
    %319 = vmatprep.subr.bf16.mxu0 0
    %320 = vmatpush1.bf16.msra.mxu0 %v279
    %321 = vmatprep.subr.bf16.mxu0 0
    %322 = vmatpush1.bf16.msra.mxu0 %v280
    %323 = vmatprep.subr.bf16.mxu0 0
    %324 = vmatpush1.bf16.msra.mxu0 %v281
    %325 = vmatprep.subr.bf16.mxu0 0
    %326 = vmatpush1.bf16.msra.mxu0 %v282
    %327 = vmatprep.subr.bf16.mxu0 0
    %328 = vmatpush1.bf16.msra.mxu0 %v283
    %329 = vmatprep.subr.bf16.mxu0 0
    %330 = vmatpush1.bf16.msra.mxu0 %v284
    %331 = vmatprep.subr.bf16.mxu0 0
    %332 = vmatpush1.bf16.msra.mxu0 %v285
    %333 = vmatprep.subr.bf16.mxu0 0
    %334 = vmatpush1.bf16.msra.mxu0 %v286
    %335 = vmatprep.mubr.bf16.mxu0 %v204
    %336 = vmatmul.mubr.bf16.gmra.mrb[0].mxu0 %v203
    %v337 = vpop.f32.mrb[0].mxu0
    %v338 = vadd.f32 %v198, %v337
    %v339 = vpop.f32.mrb[0].mxu0
    %v340 = vpop.f32.mrb[0].mxu0
    %v341 = vpop.f32.mrb[0].mxu0
    %342 = vdwg.mxu0
    %vm343 = vcmp.ge.f32.partialorder %v338, 0.0
    %v344 = vmul.f32 %v338, 0.01
    %v345 = vsel %vm343, %v338, %v344
    %v346 = vpack.c.bf16 %v345, %v345
    %v347 = vld [vmem:[#allocation10] sm:$0xff]
    %v348 = vld [vmem:[#allocation10 + $0x8] sm:$0xff]
    %v349 = vld [vmem:[#allocation10 + $0x10] sm:$0xf]
    %v350 = vld [vmem:[#allocation10 + $0x14] sm:$0xff]
    %v351 = vld [vmem:[#allocation10 + $0x1c] sm:$0xff]
    %v352 = vld [vmem:[#allocation10 + $0x24] sm:$0xf]
    %v353 = vld [vmem:[#allocation10 + $0x28] sm:$0xff]
    %v354 = vld [vmem:[#allocation10 + $0x30] sm:$0xff]
    %v355 = vld [vmem:[#allocation10 + $0x38] sm:$0xf]
    %v356 = vld [vmem:[#allocation10 + $0x3c] sm:$0xff]
    %v357 = vld [vmem:[#allocation10 + $0x44] sm:$0xff]
    %v358 = vld [vmem:[#allocation10 + $0x4c] sm:$0xf]
    %v359 = vld [vmem:[#allocation10 + $0x50] sm:$0xff]
    %v360 = vld [vmem:[#allocation10 + $0x58] sm:$0xff]
    %v361 = vld [vmem:[#allocation10 + $0x60] sm:$0xf]
    %v362 = vld [vmem:[#allocation10 + $0x64] sm:$0xff]
    %v363 = vld [vmem:[#allocation10 + $0x6c] sm:$0xff]
    %v364 = vld [vmem:[#allocation10 + $0x74] sm:$0xf]
    %v365 = vld [vmem:[#allocation10 + $0x78] sm:$0xff]
    %v366 = vld [vmem:[#allocation10 + $0x80] sm:$0xff]
    %v367 = vld [vmem:[#allocation10 + $0x88] sm:$0xf]
    %v368 = vld [vmem:[#allocation10 + $0x8c] sm:$0xff]
    %v369 = vld [vmem:[#allocation10 + $0x94] sm:$0xff]
    %v370 = vld [vmem:[#allocation10 + $0x9c] sm:$0xf]
    %v371 = vld [vmem:[#allocation10 + $0xa0] sm:$0xff]
    %v372 = vld [vmem:[#allocation10 + $0xa8] sm:$0xff]
    %v373 = vld [vmem:[#allocation10 + $0xb0] sm:$0xf]
    %v374 = vld [vmem:[#allocation10 + $0xb4] sm:$0xff]
    %v375 = vld [vmem:[#allocation10 + $0xbc] sm:$0xff]
    %v376 = vld [vmem:[#allocation10 + $0xc4] sm:$0xf]
    %v377 = vld [vmem:[#allocation10 + $0xc8] sm:$0xff]
    %v378 = vld [vmem:[#allocation10 + $0xd0] sm:$0xff]
    %v379 = vld [vmem:[#allocation10 + $0xd8] sm:$0xf]
    %v380 = vld [vmem:[#allocation10 + $0xdc] sm:$0xff]
    %v381 = vld [vmem:[#allocation10 + $0xe4] sm:$0xff]
    %v382 = vld [vmem:[#allocation10 + $0xec] sm:$0xf]
    %v383 = vld [vmem:[#allocation10 + $0xf0] sm:$0xff]
    %v384 = vld [vmem:[#allocation10 + $0xf8] sm:$0xff]
    %v385 = vld [vmem:[#allocation10 + $0x100] sm:$0xf]
    %v386 = vld [vmem:[#allocation10 + $0x104] sm:$0xff]
    %v387 = vld [vmem:[#allocation10 + $0x10c] sm:$0xff]
    %v388 = vld [vmem:[#allocation10 + $0x114] sm:$0xf]
    %v389 = vld [vmem:[#allocation10 + $0x118] sm:$0xff]
    %v390 = vld [vmem:[#allocation10 + $0x120] sm:$0xff]
    %v391 = vld [vmem:[#allocation10 + $0x128] sm:$0xf]
    %v392 = vld [vmem:[#allocation10 + $0x12c] sm:$0xff]
    %v393 = vld [vmem:[#allocation10 + $0x134] sm:$0xff]
    %v394 = vld [vmem:[#allocation10 + $0x13c] sm:$0xf]
    %v395 = vld [vmem:[#allocation11] sm:$0xff]
    %v396 = vld [vmem:[#allocation11 + $0x8] sm:$0x3]
    %398 = vset.pattern.permute.xlu0 0
    %399 = vperm.xlu0 %398, %v160
    %v400 = vpop.permute.xlu0 %399
    %v404 = vlaneseq
    %v405 = vshrl.u32 %v404, 7
    %v406 = vsub.s32 0, %v405
    %v407 = vrot.slane %v395, %v406
    %v408 = vlaneseq
    %v409 = vshrl.u32 %v408, 7
    %v410 = vsub.s32 2, %v409
    %v411 = vrot.slane %v395, %v410
    %v412 = vlaneseq
    %v413 = vshrl.u32 %v412, 7
    %v414 = vsub.s32 4, %v413
    %v415 = vrot.slane %v395, %v414
    %v416 = vlaneseq
    %v417 = vshrl.u32 %v416, 7
    %v418 = vsub.s32 6, %v417
    %v419 = vrot.slane %v395, %v418
    %v420 = vlaneseq
    %v421 = vshrl.u32 %v420, 7
    %v422 = vsub.s32 0, %v421
    %v423 = vrot.slane %v396, %v422
    %v429 = vlaneseq
    %v430 = vshrl.u32 %v429, 7
    %v431 = vsub.s32 0, %v430
    %v432 = vrot.slane %v407, %v431
    %v433 = vlaneseq
    %v434 = vshrl.u32 %v433, 7
    %v435 = vsub.s32 0, %v434
    %v436 = vrot.slane %v411, %v435
    %v437 = vlaneseq
    %v438 = vshrl.u32 %v437, 7
    %v439 = vsub.s32 0, %v438
    %v440 = vrot.slane %v415, %v439
    %v441 = vlaneseq
    %v442 = vshrl.u32 %v441, 7
    %v443 = vsub.s32 0, %v442
    %v444 = vrot.slane %v419, %v443
    %v445 = vlaneseq
    %v446 = vshrl.u32 %v445, 7
    %v447 = vsub.s32 0, %v446
    %v448 = vrot.slane %v423, %v447
    %v449 = vmul.f32 %v400, %v432
    %v450 = vmul.f32 %v400, %v436
    %v451 = vmul.f32 %v400, %v440
    %v452 = vmul.f32 %v400, %v444
    %v453 = vmul.f32 %v400, %v448
    %v502 = vunpack.c.l.b16 %v347
    %v503 = vunpack.c.h.b16 %v347
    %v504 = vunpack.c.l.b16 %v348
    %v505 = vunpack.c.h.b16 %v348
    %v506 = vunpack.c.l.b16 %v349
    %v507 = vunpack.c.l.b16 %v350
    %v508 = vunpack.c.h.b16 %v350
    %v509 = vunpack.c.l.b16 %v351
    %v510 = vunpack.c.h.b16 %v351
    %v511 = vunpack.c.l.b16 %v352
    %v512 = vunpack.c.l.b16 %v353
    %v513 = vunpack.c.h.b16 %v353
    %v514 = vunpack.c.l.b16 %v354
    %v515 = vunpack.c.h.b16 %v354
    %v516 = vunpack.c.l.b16 %v355
    %v517 = vunpack.c.l.b16 %v356
    %v518 = vunpack.c.h.b16 %v356
    %v519 = vunpack.c.l.b16 %v357
    %v520 = vunpack.c.h.b16 %v357
    %v521 = vunpack.c.l.b16 %v358
    %v522 = vunpack.c.l.b16 %v359
    %v523 = vunpack.c.h.b16 %v359
    %v524 = vunpack.c.l.b16 %v360
    %v525 = vunpack.c.h.b16 %v360
    %v526 = vunpack.c.l.b16 %v361
    %v527 = vunpack.c.l.b16 %v362
    %v528 = vunpack.c.h.b16 %v362
    %v529 = vunpack.c.l.b16 %v363
    %v530 = vunpack.c.h.b16 %v363
    %v531 = vunpack.c.l.b16 %v364
    %v532 = vunpack.c.l.b16 %v365
    %v533 = vunpack.c.h.b16 %v365
    %v534 = vunpack.c.l.b16 %v366
    %v535 = vunpack.c.h.b16 %v366
    %v536 = vunpack.c.l.b16 %v367
    %v537 = vunpack.c.l.b16 %v368
    %v538 = vunpack.c.h.b16 %v368
    %v539 = vunpack.c.l.b16 %v369
    %v540 = vunpack.c.h.b16 %v369
    %v541 = vunpack.c.l.b16 %v370
    %v542 = vunpack.c.l.b16 %v371
    %v543 = vunpack.c.h.b16 %v371
    %v544 = vunpack.c.l.b16 %v372
    %v545 = vunpack.c.h.b16 %v372
    %v546 = vunpack.c.l.b16 %v373
    %v547 = vunpack.c.l.b16 %v374
    %v548 = vunpack.c.h.b16 %v374
    %v549 = vunpack.c.l.b16 %v375
    %v550 = vunpack.c.h.b16 %v375
    %v551 = vunpack.c.l.b16 %v376
    %v552 = vunpack.c.l.b16 %v377
    %v553 = vunpack.c.h.b16 %v377
    %v554 = vunpack.c.l.b16 %v378
    %v555 = vunpack.c.h.b16 %v378
    %v556 = vunpack.c.l.b16 %v379
    %v557 = vunpack.c.l.b16 %v380
    %v558 = vunpack.c.h.b16 %v380
    %v559 = vunpack.c.l.b16 %v381
    %v560 = vunpack.c.h.b16 %v381
    %v561 = vunpack.c.l.b16 %v382
    %v562 = vunpack.c.l.b16 %v383
    %v563 = vunpack.c.h.b16 %v383
    %v564 = vunpack.c.l.b16 %v384
    %v565 = vunpack.c.h.b16 %v384
    %v566 = vunpack.c.l.b16 %v385
    %v567 = vunpack.c.l.b16 %v386
    %v568 = vunpack.c.h.b16 %v386
    %v569 = vunpack.c.l.b16 %v387
    %v570 = vunpack.c.h.b16 %v387
    %v571 = vunpack.c.l.b16 %v388
    %v572 = vunpack.c.l.b16 %v389
    %v573 = vunpack.c.h.b16 %v389
    %v574 = vunpack.c.l.b16 %v390
    %v575 = vunpack.c.h.b16 %v390
    %v576 = vunpack.c.l.b16 %v391
    %v577 = vunpack.c.l.b16 %v392
    %v578 = vunpack.c.h.b16 %v392
    %v579 = vunpack.c.l.b16 %v393
    %v580 = vunpack.c.h.b16 %v393
    %v581 = vunpack.c.l.b16 %v394
    %v582 = vpack.c.b16 %v507, %v502
    %v583 = vpack.c.b16 %v508, %v503
    %v584 = vpack.c.b16 %v509, %v504
    %v585 = vpack.c.b16 %v510, %v505
    %v586 = vpack.c.b16 %v511, %v506
    %v587 = vpack.c.b16 %v517, %v512
    %v588 = vpack.c.b16 %v518, %v513
    %v589 = vpack.c.b16 %v519, %v514
    %v590 = vpack.c.b16 %v520, %v515
    %v591 = vpack.c.b16 %v521, %v516
    %v592 = vpack.c.b16 %v527, %v522
    %v593 = vpack.c.b16 %v528, %v523
    %v594 = vpack.c.b16 %v529, %v524
    %v595 = vpack.c.b16 %v530, %v525
    %v596 = vpack.c.b16 %v531, %v526
    %v597 = vpack.c.b16 %v537, %v532
    %v598 = vpack.c.b16 %v538, %v533
    %v599 = vpack.c.b16 %v539, %v534
    %v600 = vpack.c.b16 %v540, %v535
    %v601 = vpack.c.b16 %v541, %v536
    %v602 = vpack.c.b16 %v547, %v542
    %v603 = vpack.c.b16 %v548, %v543
    %v604 = vpack.c.b16 %v549, %v544
    %v605 = vpack.c.b16 %v550, %v545
    %v606 = vpack.c.b16 %v551, %v546
    %v607 = vpack.c.b16 %v557, %v552
    %v608 = vpack.c.b16 %v558, %v553
    %v609 = vpack.c.b16 %v559, %v554
    %v610 = vpack.c.b16 %v560, %v555
    %v611 = vpack.c.b16 %v561, %v556
    %v612 = vpack.c.b16 %v567, %v562
    %v613 = vpack.c.b16 %v568, %v563
    %v614 = vpack.c.b16 %v569, %v564
    %v615 = vpack.c.b16 %v570, %v565
    %v616 = vpack.c.b16 %v571, %v566
    %v617 = vpack.c.b16 %v577, %v572
    %v618 = vpack.c.b16 %v578, %v573
    %v619 = vpack.c.b16 %v579, %v574
    %v620 = vpack.c.b16 %v580, %v575
    %v621 = vpack.c.b16 %v581, %v576
    %662 = vmatprep.subr.bf16.mxu0 %v583
    %663 = vmatpush1.bf16.msra.mxu0 %v582
    %664 = vmatprep.subr.bf16.mxu0 %v588
    %665 = vmatpush1.bf16.msra.mxu0 %v587
    %666 = vmatprep.subr.bf16.mxu0 %v593
    %667 = vmatpush1.bf16.msra.mxu0 %v592
    %668 = vmatprep.subr.bf16.mxu0 %v598
    %669 = vmatpush1.bf16.msra.mxu0 %v597
    %670 = vmatprep.subr.bf16.mxu0 %v603
    %671 = vmatpush1.bf16.msra.mxu0 %v602
    %672 = vmatprep.subr.bf16.mxu0 %v608
    %673 = vmatpush1.bf16.msra.mxu0 %v607
    %674 = vmatprep.subr.bf16.mxu0 %v613
    %675 = vmatpush1.bf16.msra.mxu0 %v612
    %676 = vmatprep.subr.bf16.mxu0 %v618
    %677 = vmatpush1.bf16.msra.mxu0 %v617
    %678 = vmatprep.subr.bf16.mxu0 0
    %679 = vmatpush1.bf16.msra.mxu0 0
    %680 = vmatprep.subr.bf16.mxu0 0
    %681 = vmatpush1.bf16.msra.mxu0 0
    %682 = vmatprep.subr.bf16.mxu0 0
    %683 = vmatpush1.bf16.msra.mxu0 0
    %684 = vmatprep.subr.bf16.mxu0 0
    %685 = vmatpush1.bf16.msra.mxu0 0
    %686 = vmatprep.subr.bf16.mxu0 0
    %687 = vmatpush1.bf16.msra.mxu0 0
    %688 = vmatprep.subr.bf16.mxu0 0
    %689 = vmatpush1.bf16.msra.mxu0 0
    %690 = vmatprep.subr.bf16.mxu0 0
    %691 = vmatpush1.bf16.msra.mxu0 0
    %692 = vmatprep.subr.bf16.mxu0 0
    %693 = vmatpush1.bf16.msra.mxu0 0
    %694 = vmatprep.mubr.bf16.mxu0 0
    %695 = vmatmul.mubr.bf16.gmra.mrb[0].mxu0 %v346
    %v696 = vpop.f32.mrb[0].mxu0
    %v697 = vadd.f32 %v449, %v696
    %v698 = vpop.f32.mrb[0].mxu0
    %v699 = vadd.f32 %v450, %v698
    %v700 = vpop.f32.mrb[0].mxu0
    %v701 = vpop.f32.mrb[0].mxu0
    %702 = vdwg.mxu0
    %703 = vmatprep.subr.bf16.mxu0 %v585
    %704 = vmatpush1.bf16.msra.mxu0 %v584
    %705 = vmatprep.subr.bf16.mxu0 %v590
    %706 = vmatpush1.bf16.msra.mxu0 %v589
    %707 = vmatprep.subr.bf16.mxu0 %v595
    %708 = vmatpush1.bf16.msra.mxu0 %v594
    %709 = vmatprep.subr.bf16.mxu0 %v600
    %710 = vmatpush1.bf16.msra.mxu0 %v599
    %711 = vmatprep.subr.bf16.mxu0 %v605
    %712 = vmatpush1.bf16.msra.mxu0 %v604
    %713 = vmatprep.subr.bf16.mxu0 %v610
    %714 = vmatpush1.bf16.msra.mxu0 %v609
    %715 = vmatprep.subr.bf16.mxu0 %v615
    %716 = vmatpush1.bf16.msra.mxu0 %v614
    %717 = vmatprep.subr.bf16.mxu0 %v620
    %718 = vmatpush1.bf16.msra.mxu0 %v619
    %719 = vmatprep.subr.bf16.mxu0 0
    %720 = vmatpush1.bf16.msra.mxu0 0
    %721 = vmatprep.subr.bf16.mxu0 0
    %722 = vmatpush1.bf16.msra.mxu0 0
    %723 = vmatprep.subr.bf16.mxu0 0
    %724 = vmatpush1.bf16.msra.mxu0 0
    %725 = vmatprep.subr.bf16.mxu0 0
    %726 = vmatpush1.bf16.msra.mxu0 0
    %727 = vmatprep.subr.bf16.mxu0 0
    %728 = vmatpush1.bf16.msra.mxu0 0
    %729 = vmatprep.subr.bf16.mxu0 0
    %730 = vmatpush1.bf16.msra.mxu0 0
    %731 = vmatprep.subr.bf16.mxu0 0
    %732 = vmatpush1.bf16.msra.mxu0 0
    %733 = vmatprep.subr.bf16.mxu0 0
    %734 = vmatpush1.bf16.msra.mxu0 0
    %735 = vmatprep.mubr.bf16.mxu0 0
    %736 = vmatmul.mubr.bf16.gmra.mrb[0].mxu0 %v346
    %v737 = vpop.f32.mrb[0].mxu0
    %v738 = vadd.f32 %v451, %v737
    %v739 = vpop.f32.mrb[0].mxu0
    %v740 = vadd.f32 %v452, %v739
    %v741 = vpop.f32.mrb[0].mxu0
    %v742 = vpop.f32.mrb[0].mxu0
    %743 = vdwg.mxu0
    %744 = vmatprep.subr.bf16.mxu0 0
    %745 = vmatpush1.bf16.msra.mxu0 %v586
    %746 = vmatprep.subr.bf16.mxu0 0
    %747 = vmatpush1.bf16.msra.mxu0 %v591
    %748 = vmatprep.subr.bf16.mxu0 0
    %749 = vmatpush1.bf16.msra.mxu0 %v596
    %750 = vmatprep.subr.bf16.mxu0 0
    %751 = vmatpush1.bf16.msra.mxu0 %v601
    %752 = vmatprep.subr.bf16.mxu0 0
    %753 = vmatpush1.bf16.msra.mxu0 %v606
    %754 = vmatprep.subr.bf16.mxu0 0
    %755 = vmatpush1.bf16.msra.mxu0 %v611
    %756 = vmatprep.subr.bf16.mxu0 0
    %757 = vmatpush1.bf16.msra.mxu0 %v616
    %758 = vmatprep.subr.bf16.mxu0 0
    %759 = vmatpush1.bf16.msra.mxu0 %v621
    %760 = vmatprep.subr.bf16.mxu0 0
    %761 = vmatpush1.bf16.msra.mxu0 0
    %762 = vmatprep.subr.bf16.mxu0 0
    %763 = vmatpush1.bf16.msra.mxu0 0
    %764 = vmatprep.subr.bf16.mxu0 0
    %765 = vmatpush1.bf16.msra.mxu0 0
    %766 = vmatprep.subr.bf16.mxu0 0
    %767 = vmatpush1.bf16.msra.mxu0 0
    %768 = vmatprep.subr.bf16.mxu0 0
    %769 = vmatpush1.bf16.msra.mxu0 0
    %770 = vmatprep.subr.bf16.mxu0 0
    %771 = vmatpush1.bf16.msra.mxu0 0
    %772 = vmatprep.subr.bf16.mxu0 0
    %773 = vmatpush1.bf16.msra.mxu0 0
    %774 = vmatprep.subr.bf16.mxu0 0
    %775 = vmatpush1.bf16.msra.mxu0 0
    %776 = vmatprep.mubr.bf16.mxu0 0
    %777 = vmatmul.mubr.bf16.gmra.mrb[0].mxu0 %v346
    %v778 = vpop.f32.mrb[0].mxu0
    %v779 = vadd.f32 %v453, %v778
    %v780 = vpop.f32.mrb[0].mxu0
    %v781 = vpop.f32.mrb[0].mxu0
    %v782 = vpop.f32.mrb[0].mxu0
    %783 = vdwg.mxu0
    %784 = vset.pattern.permute.xlu0 1
    %785 = vperm.xlu0 %784, %v160
    %v786 = vpop.permute.xlu0 %785
    %v788 = vlaneseq
    %v789 = vshrl.u32 %v788, 7
    %v790 = vsub.s32 1, %v789
    %v791 = vrot.slane %v395, %v790
    %v792 = vlaneseq
    %v793 = vshrl.u32 %v792, 7
    %v794 = vsub.s32 3, %v793
    %v795 = vrot.slane %v395, %v794
    %v796 = vlaneseq
    %v797 = vshrl.u32 %v796, 7
    %v798 = vsub.s32 5, %v797
    %v799 = vrot.slane %v395, %v798
    %v800 = vlaneseq
    %v801 = vshrl.u32 %v800, 7
    %v802 = vsub.s32 7, %v801
    %v803 = vrot.slane %v395, %v802
    %v804 = vlaneseq
    %v805 = vshrl.u32 %v804, 7
    %v806 = vsub.s32 1, %v805
    %v807 = vrot.slane %v396, %v806
    %v813 = vlaneseq
    %v814 = vshrl.u32 %v813, 7
    %v815 = vsub.s32 1, %v814
    %v816 = vrot.slane %v791, %v815
    %v817 = vlaneseq
    %v818 = vshrl.u32 %v817, 7
    %v819 = vsub.s32 1, %v818
    %v820 = vrot.slane %v795, %v819
    %v821 = vlaneseq
    %v822 = vshrl.u32 %v821, 7
    %v823 = vsub.s32 1, %v822
    %v824 = vrot.slane %v799, %v823
    %v825 = vlaneseq
    %v826 = vshrl.u32 %v825, 7
    %v827 = vsub.s32 1, %v826
    %v828 = vrot.slane %v803, %v827
    %v829 = vlaneseq
    %v830 = vshrl.u32 %v829, 7
    %v831 = vsub.s32 1, %v830
    %v832 = vrot.slane %v807, %v831
    %v833 = vmul.f32 %v786, %v816
    %v834 = vmul.f32 %v786, %v820
    %v835 = vmul.f32 %v786, %v824
    %v836 = vmul.f32 %v786, %v828
    %v837 = vmul.f32 %v786, %v832
    %v838 = vadd.f32 %v697, %v833
    %v839 = vadd.f32 %v699, %v834
    %v840 = vadd.f32 %v738, %v835
    %v841 = vadd.f32 %v740, %v836
    %v842 = vadd.f32 %v779, %v837
    %v843 = vld [vmem:[#allocation13] sm:$0x1f]
    %v845 = vlaneseq
    %v846 = vshrl.u32 %v845, 7
    %v847 = vsub.s32 0, %v846
    %v848 = vrot.slane %v843, %v847
    %v849 = vlaneseq
    %v850 = vshrl.u32 %v849, 7
    %v851 = vsub.s32 1, %v850
    %v852 = vrot.slane %v843, %v851
    %v853 = vlaneseq
    %v854 = vshrl.u32 %v853, 7
    %v855 = vsub.s32 2, %v854
    %v856 = vrot.slane %v843, %v855
    %v857 = vlaneseq
    %v858 = vshrl.u32 %v857, 7
    %v859 = vsub.s32 3, %v858
    %v860 = vrot.slane %v843, %v859
    %v861 = vlaneseq
    %v862 = vshrl.u32 %v861, 7
    %v863 = vsub.s32 4, %v862
    %v864 = vrot.slane %v843, %v863
    %v870 = vadd.f32 %v838, %v848
    %v871 = vadd.f32 %v839, %v852
    %v872 = vadd.f32 %v840, %v856
    %v873 = vadd.f32 %v841, %v860
    %v874 = vadd.f32 %v842, %v864
    %vm875 = vcmp.ge.f32.partialorder %v870, 0.0
    %vm876 = vcmp.ge.f32.partialorder %v871, 0.0
    %vm877 = vcmp.ge.f32.partialorder %v872, 0.0
    %vm878 = vcmp.ge.f32.partialorder %v873, 0.0
    %vm879 = vcmp.ge.f32.partialorder %v874, 0.0
    %v880 = vmul.f32 %v870, 0.01
    %v881 = vmul.f32 %v871, 0.01
    %v882 = vmul.f32 %v872, 0.01
    %v883 = vmul.f32 %v873, 0.01
    %v884 = vmul.f32 %v874, 0.01
    %v885 = vsel %vm875, %v870, %v880
    %v886 = vsel %vm876, %v871, %v881
    %v887 = vsel %vm877, %v872, %v882
    %v888 = vsel %vm878, %v873, %v883
    %v889 = vsel %vm879, %v874, %v884
    %v890 = vpack.c.bf16 %v885, %v885
    %v891 = vpack.c.bf16 %v886, %v886
    %v892 = vpack.c.bf16 %v887, %v887
    %v893 = vpack.c.bf16 %v888, %v888
    %v894 = vpack.c.bf16 %v889, %v889
    %v895 = vld [vmem:[#allocation14 + $0x100] sm:$0xf]
    %v896 = vld [vmem:[#allocation14 + $0x104] sm:$0xf]
    %v897 = vld [vmem:[#allocation14 + $0x108] sm:$0xf]
    %v898 = vld [vmem:[#allocation14 + $0x10c] sm:$0xf]
    %v899 = vld [vmem:[#allocation14 + $0x110] sm:$0xf]
    %v900 = vld [vmem:[#allocation14 + $0x114] sm:$0xf]
    %v901 = vld [vmem:[#allocation14 + $0x118] sm:$0xf]
    %v902 = vld [vmem:[#allocation14 + $0x11c] sm:$0xf]
    %v903 = vld [vmem:[#allocation14 + $0x120] sm:$0xf]
    %v904 = vld [vmem:[#allocation14 + $0x124] sm:$0xf]
    %v905 = vld [vmem:[#allocation14 + $0x128] sm:$0xf]
    %v906 = vld [vmem:[#allocation14 + $0x12c] sm:$0xf]
    %v907 = vld [vmem:[#allocation14 + $0x130] sm:$0xf]
    %v908 = vld [vmem:[#allocation14 + $0x134] sm:$0xf]
    %v909 = vld [vmem:[#allocation14 + $0x138] sm:$0xf]
    %v910 = vld [vmem:[#allocation14 + $0x13c] sm:$0xf]
    %v911 = vld [vmem:[#allocation17] sm:$0x1]
    %v913 = vlaneseq
    %v914 = vshrl.u32 %v913, 7
    %v915 = vsub.s32 0, %v914
    %v916 = vrot.slane %v911, %v915
    %v934 = vunpack.c.l.b16 %v895
    %v935 = vunpack.c.l.b16 %v896
    %v936 = vunpack.c.l.b16 %v897
    %v937 = vunpack.c.l.b16 %v898
    %v938 = vunpack.c.l.b16 %v899
    %v939 = vunpack.c.l.b16 %v900
    %v940 = vunpack.c.l.b16 %v901
    %v941 = vunpack.c.l.b16 %v902
    %v942 = vunpack.c.l.b16 %v903
    %v943 = vunpack.c.l.b16 %v904
    %v944 = vunpack.c.l.b16 %v905
    %v945 = vunpack.c.l.b16 %v906
    %v946 = vunpack.c.l.b16 %v907
    %v947 = vunpack.c.l.b16 %v908
    %v948 = vunpack.c.l.b16 %v909
    %v949 = vunpack.c.l.b16 %v910
    %v950 = vpack.c.b16 %v935, %v934
    %v951 = vpack.c.b16 %v937, %v936
    %v952 = vpack.c.b16 %v939, %v938
    %v953 = vpack.c.b16 %v941, %v940
    %v954 = vpack.c.b16 %v943, %v942
    %v955 = vpack.c.b16 %v945, %v944
    %v956 = vpack.c.b16 %v947, %v946
    %v957 = vpack.c.b16 %v949, %v948
    %966 = vmatprep.subr.bf16.mxu0 0
    %967 = vmatpush1.bf16.msra.mxu0 %v950
    %968 = vmatprep.subr.bf16.mxu0 0
    %969 = vmatpush1.bf16.msra.mxu0 %v951
    %970 = vmatprep.subr.bf16.mxu0 0
    %971 = vmatpush1.bf16.msra.mxu0 %v952
    %972 = vmatprep.subr.bf16.mxu0 0
    %973 = vmatpush1.bf16.msra.mxu0 %v953
    %974 = vmatprep.subr.bf16.mxu0 0
    %975 = vmatpush1.bf16.msra.mxu0 %v954
    %976 = vmatprep.subr.bf16.mxu0 0
    %977 = vmatpush1.bf16.msra.mxu0 %v955
    %978 = vmatprep.subr.bf16.mxu0 0
    %979 = vmatpush1.bf16.msra.mxu0 %v956
    %980 = vmatprep.subr.bf16.mxu0 0
    %981 = vmatpush1.bf16.msra.mxu0 %v957
    %982 = vmatprep.subr.bf16.mxu0 0
    %983 = vmatpush1.bf16.msra.mxu0 0
    %984 = vmatprep.subr.bf16.mxu0 0
    %985 = vmatpush1.bf16.msra.mxu0 0
    %986 = vmatprep.subr.bf16.mxu0 0
    %987 = vmatpush1.bf16.msra.mxu0 0
    %988 = vmatprep.subr.bf16.mxu0 0
    %989 = vmatpush1.bf16.msra.mxu0 0
    %990 = vmatprep.subr.bf16.mxu0 0
    %991 = vmatpush1.bf16.msra.mxu0 0
    %992 = vmatprep.subr.bf16.mxu0 0
    %993 = vmatpush1.bf16.msra.mxu0 0
    %994 = vmatprep.subr.bf16.mxu0 0
    %995 = vmatpush1.bf16.msra.mxu0 0
    %996 = vmatprep.subr.bf16.mxu0 0
    %997 = vmatpush1.bf16.msra.mxu0 0
    %998 = vmatprep.mubr.bf16.mxu0 0
    %999 = vmatmul.mubr.bf16.gmra.mrb[0].mxu0 %v894
    %v1000 = vpop.f32.mrb[0].mxu0
    %v1001 = vadd.f32 %v916, %v1000
    %v1002 = vpop.f32.mrb[0].mxu0
    %v1003 = vpop.f32.mrb[0].mxu0
    %v1004 = vpop.f32.mrb[0].mxu0
    %1005 = vdwg.mxu0
    %v1006 = vld [vmem:[#allocation14] sm:$0xf]
    %v1007 = vld [vmem:[#allocation14 + $0x4] sm:$0xf]
    %v1008 = vld [vmem:[#allocation14 + $0x8] sm:$0xf]
    %v1009 = vld [vmem:[#allocation14 + $0xc] sm:$0xf]
    %v1010 = vld [vmem:[#allocation14 + $0x10] sm:$0xf]
    %v1011 = vld [vmem:[#allocation14 + $0x14] sm:$0xf]
    %v1012 = vld [vmem:[#allocation14 + $0x18] sm:$0xf]
    %v1013 = vld [vmem:[#allocation14 + $0x1c] sm:$0xf]
    %v1014 = vld [vmem:[#allocation14 + $0x20] sm:$0xf]
    %v1015 = vld [vmem:[#allocation14 + $0x24] sm:$0xf]
    %v1016 = vld [vmem:[#allocation14 + $0x28] sm:$0xf]
    %v1017 = vld [vmem:[#allocation14 + $0x2c] sm:$0xf]
    %v1018 = vld [vmem:[#allocation14 + $0x30] sm:$0xf]
    %v1019 = vld [vmem:[#allocation14 + $0x34] sm:$0xf]
    %v1020 = vld [vmem:[#allocation14 + $0x38] sm:$0xf]
    %v1021 = vld [vmem:[#allocation14 + $0x3c] sm:$0xf]
    %v1022 = vld [vmem:[#allocation16] sm:$0x1]
    %v1023 = vlaneseq
    %v1024 = vshrl.u32 %v1023, 7
    %v1025 = vsub.s32 0, %v1024
    %v1026 = vrot.slane %v1022, %v1025
    %v1043 = vunpack.c.l.b16 %v1006
    %v1044 = vunpack.c.l.b16 %v1007
    %v1045 = vunpack.c.l.b16 %v1008
    %v1046 = vunpack.c.l.b16 %v1009
    %v1047 = vunpack.c.l.b16 %v1010
    %v1048 = vunpack.c.l.b16 %v1011
    %v1049 = vunpack.c.l.b16 %v1012
    %v1050 = vunpack.c.l.b16 %v1013
    %v1051 = vunpack.c.l.b16 %v1014
    %v1052 = vunpack.c.l.b16 %v1015
    %v1053 = vunpack.c.l.b16 %v1016
    %v1054 = vunpack.c.l.b16 %v1017
    %v1055 = vunpack.c.l.b16 %v1018
    %v1056 = vunpack.c.l.b16 %v1019
    %v1057 = vunpack.c.l.b16 %v1020
    %v1058 = vunpack.c.l.b16 %v1021
    %v1059 = vpack.c.b16 %v1044, %v1043
    %v1060 = vpack.c.b16 %v1046, %v1045
    %v1061 = vpack.c.b16 %v1048, %v1047
    %v1062 = vpack.c.b16 %v1050, %v1049
    %v1063 = vpack.c.b16 %v1052, %v1051
    %v1064 = vpack.c.b16 %v1054, %v1053
    %v1065 = vpack.c.b16 %v1056, %v1055
    %v1066 = vpack.c.b16 %v1058, %v1057
    %1075 = vmatprep.subr.bf16.mxu0 0
    %1076 = vmatpush1.bf16.msra.mxu0 %v1059
    %1077 = vmatprep.subr.bf16.mxu0 0
    %1078 = vmatpush1.bf16.msra.mxu0 %v1060
    %1079 = vmatprep.subr.bf16.mxu0 0
    %1080 = vmatpush1.bf16.msra.mxu0 %v1061
    %1081 = vmatprep.subr.bf16.mxu0 0
    %1082 = vmatpush1.bf16.msra.mxu0 %v1062
    %1083 = vmatprep.subr.bf16.mxu0 0
    %1084 = vmatpush1.bf16.msra.mxu0 %v1063
    %1085 = vmatprep.subr.bf16.mxu0 0
    %1086 = vmatpush1.bf16.msra.mxu0 %v1064
    %1087 = vmatprep.subr.bf16.mxu0 0
    %1088 = vmatpush1.bf16.msra.mxu0 %v1065
    %1089 = vmatprep.subr.bf16.mxu0 0
    %1090 = vmatpush1.bf16.msra.mxu0 %v1066
    %1091 = vmatprep.subr.bf16.mxu0 0
    %1092 = vmatpush1.bf16.msra.mxu0 0
    %1093 = vmatprep.subr.bf16.mxu0 0
    %1094 = vmatpush1.bf16.msra.mxu0 0
    %1095 = vmatprep.subr.bf16.mxu0 0
    %1096 = vmatpush1.bf16.msra.mxu0 0
    %1097 = vmatprep.subr.bf16.mxu0 0
    %1098 = vmatpush1.bf16.msra.mxu0 0
    %1099 = vmatprep.subr.bf16.mxu0 0
    %1100 = vmatpush1.bf16.msra.mxu0 0
    %1101 = vmatprep.subr.bf16.mxu0 0
    %1102 = vmatpush1.bf16.msra.mxu0 0
    %1103 = vmatprep.subr.bf16.mxu0 0
    %1104 = vmatpush1.bf16.msra.mxu0 0
    %1105 = vmatprep.subr.bf16.mxu0 0
    %1106 = vmatpush1.bf16.msra.mxu0 0
    %1107 = vmatprep.mubr.bf16.mxu0 0
    %1108 = vmatmul.mubr.bf16.gmra.mrb[0].mxu0 %v890
    %v1109 = vpop.f32.mrb[0].mxu0
    %v1110 = vadd.f32 %v1026, %v1109
    %v1111 = vpop.f32.mrb[0].mxu0
    %v1112 = vpop.f32.mrb[0].mxu0
    %v1113 = vpop.f32.mrb[0].mxu0
    %1114 = vdwg.mxu0
    %1115 = vset.pattern.permute.xlu0 2
    %1116 = vperm.xlu0 %1115, %v160
    %v1117 = vpop.permute.xlu0 %1116
    %v1119 = vmul.f32 %v1117, %v1110
    %v1120 = vadd.f32 %v1001, %v1119
    %v1121 = vld [vmem:[#allocation14 + $0x40] sm:$0xf]
    %v1122 = vld [vmem:[#allocation14 + $0x44] sm:$0xf]
    %v1123 = vld [vmem:[#allocation14 + $0x48] sm:$0xf]
    %v1124 = vld [vmem:[#allocation14 + $0x4c] sm:$0xf]
    %v1125 = vld [vmem:[#allocation14 + $0x50] sm:$0xf]
    %v1126 = vld [vmem:[#allocation14 + $0x54] sm:$0xf]
    %v1127 = vld [vmem:[#allocation14 + $0x58] sm:$0xf]
    %v1128 = vld [vmem:[#allocation14 + $0x5c] sm:$0xf]
    %v1129 = vld [vmem:[#allocation14 + $0x60] sm:$0xf]
    %v1130 = vld [vmem:[#allocation14 + $0x64] sm:$0xf]
    %v1131 = vld [vmem:[#allocation14 + $0x68] sm:$0xf]
    %v1132 = vld [vmem:[#allocation14 + $0x6c] sm:$0xf]
    %v1133 = vld [vmem:[#allocation14 + $0x70] sm:$0xf]
    %v1134 = vld [vmem:[#allocation14 + $0x74] sm:$0xf]
    %v1135 = vld [vmem:[#allocation14 + $0x78] sm:$0xf]
    %v1136 = vld [vmem:[#allocation14 + $0x7c] sm:$0xf]
    %v1137 = vld [vmem:[#allocation16 + $0x1] sm:$0x1]
    %v1138 = vlaneseq
    %v1139 = vshrl.u32 %v1138, 7
    %v1140 = vsub.s32 0, %v1139
    %v1141 = vrot.slane %v1137, %v1140
    %v1158 = vunpack.c.l.b16 %v1121
    %v1159 = vunpack.c.l.b16 %v1122
    %v1160 = vunpack.c.l.b16 %v1123
    %v1161 = vunpack.c.l.b16 %v1124
    %v1162 = vunpack.c.l.b16 %v1125
    %v1163 = vunpack.c.l.b16 %v1126
    %v1164 = vunpack.c.l.b16 %v1127
    %v1165 = vunpack.c.l.b16 %v1128
    %v1166 = vunpack.c.l.b16 %v1129
    %v1167 = vunpack.c.l.b16 %v1130
    %v1168 = vunpack.c.l.b16 %v1131
    %v1169 = vunpack.c.l.b16 %v1132
    %v1170 = vunpack.c.l.b16 %v1133
    %v1171 = vunpack.c.l.b16 %v1134
    %v1172 = vunpack.c.l.b16 %v1135
    %v1173 = vunpack.c.l.b16 %v1136
    %v1174 = vpack.c.b16 %v1159, %v1158
    %v1175 = vpack.c.b16 %v1161, %v1160
    %v1176 = vpack.c.b16 %v1163, %v1162
    %v1177 = vpack.c.b16 %v1165, %v1164
    %v1178 = vpack.c.b16 %v1167, %v1166
    %v1179 = vpack.c.b16 %v1169, %v1168
    %v1180 = vpack.c.b16 %v1171, %v1170
    %v1181 = vpack.c.b16 %v1173, %v1172
    %1190 = vmatprep.subr.bf16.mxu0 0
    %1191 = vmatpush1.bf16.msra.mxu0 %v1174
    %1192 = vmatprep.subr.bf16.mxu0 0
    %1193 = vmatpush1.bf16.msra.mxu0 %v1175
    %1194 = vmatprep.subr.bf16.mxu0 0
    %1195 = vmatpush1.bf16.msra.mxu0 %v1176
    %1196 = vmatprep.subr.bf16.mxu0 0
    %1197 = vmatpush1.bf16.msra.mxu0 %v1177
    %1198 = vmatprep.subr.bf16.mxu0 0
    %1199 = vmatpush1.bf16.msra.mxu0 %v1178
    %1200 = vmatprep.subr.bf16.mxu0 0
    %1201 = vmatpush1.bf16.msra.mxu0 %v1179
    %1202 = vmatprep.subr.bf16.mxu0 0
    %1203 = vmatpush1.bf16.msra.mxu0 %v1180
    %1204 = vmatprep.subr.bf16.mxu0 0
    %1205 = vmatpush1.bf16.msra.mxu0 %v1181
    %1206 = vmatprep.subr.bf16.mxu0 0
    %1207 = vmatpush1.bf16.msra.mxu0 0
    %1208 = vmatprep.subr.bf16.mxu0 0
    %1209 = vmatpush1.bf16.msra.mxu0 0
    %1210 = vmatprep.subr.bf16.mxu0 0
    %1211 = vmatpush1.bf16.msra.mxu0 0
    %1212 = vmatprep.subr.bf16.mxu0 0
    %1213 = vmatpush1.bf16.msra.mxu0 0
    %1214 = vmatprep.subr.bf16.mxu0 0
    %1215 = vmatpush1.bf16.msra.mxu0 0
    %1216 = vmatprep.subr.bf16.mxu0 0
    %1217 = vmatpush1.bf16.msra.mxu0 0
    %1218 = vmatprep.subr.bf16.mxu0 0
    %1219 = vmatpush1.bf16.msra.mxu0 0
    %1220 = vmatprep.subr.bf16.mxu0 0
    %1221 = vmatpush1.bf16.msra.mxu0 0
    %1222 = vmatprep.mubr.bf16.mxu0 0
    %1223 = vmatmul.mubr.bf16.gmra.mrb[0].mxu0 %v891
    %v1224 = vpop.f32.mrb[0].mxu0
    %v1225 = vadd.f32 %v1141, %v1224
    %v1226 = vpop.f32.mrb[0].mxu0
    %v1227 = vpop.f32.mrb[0].mxu0
    %v1228 = vpop.f32.mrb[0].mxu0
    %1229 = vdwg.mxu0
    %1230 = vset.pattern.permute.xlu0 3
    %1231 = vperm.xlu0 %1230, %v160
    %v1232 = vpop.permute.xlu0 %1231
    %v1234 = vmul.f32 %v1232, %v1225
    %v1235 = vadd.f32 %v1120, %v1234
    %v1236 = vld [vmem:[#allocation14 + $0x80] sm:$0xf]
    %v1237 = vld [vmem:[#allocation14 + $0x84] sm:$0xf]
    %v1238 = vld [vmem:[#allocation14 + $0x88] sm:$0xf]
    %v1239 = vld [vmem:[#allocation14 + $0x8c] sm:$0xf]
    %v1240 = vld [vmem:[#allocation14 + $0x90] sm:$0xf]
    %v1241 = vld [vmem:[#allocation14 + $0x94] sm:$0xf]
    %v1242 = vld [vmem:[#allocation14 + $0x98] sm:$0xf]
    %v1243 = vld [vmem:[#allocation14 + $0x9c] sm:$0xf]
    %v1244 = vld [vmem:[#allocation14 + $0xa0] sm:$0xf]
    %v1245 = vld [vmem:[#allocation14 + $0xa4] sm:$0xf]
    %v1246 = vld [vmem:[#allocation14 + $0xa8] sm:$0xf]
    %v1247 = vld [vmem:[#allocation14 + $0xac] sm:$0xf]
    %v1248 = vld [vmem:[#allocation14 + $0xb0] sm:$0xf]
    %v1249 = vld [vmem:[#allocation14 + $0xb4] sm:$0xf]
    %v1250 = vld [vmem:[#allocation14 + $0xb8] sm:$0xf]
    %v1251 = vld [vmem:[#allocation14 + $0xbc] sm:$0xf]
    %v1252 = vld [vmem:[#allocation16 + $0x2] sm:$0x1]
    %v1253 = vlaneseq
    %v1254 = vshrl.u32 %v1253, 7
    %v1255 = vsub.s32 0, %v1254
    %v1256 = vrot.slane %v1252, %v1255
    %v1273 = vunpack.c.l.b16 %v1236
    %v1274 = vunpack.c.l.b16 %v1237
    %v1275 = vunpack.c.l.b16 %v1238
    %v1276 = vunpack.c.l.b16 %v1239
    %v1277 = vunpack.c.l.b16 %v1240
    %v1278 = vunpack.c.l.b16 %v1241
    %v1279 = vunpack.c.l.b16 %v1242
    %v1280 = vunpack.c.l.b16 %v1243
    %v1281 = vunpack.c.l.b16 %v1244
    %v1282 = vunpack.c.l.b16 %v1245
    %v1283 = vunpack.c.l.b16 %v1246
    %v1284 = vunpack.c.l.b16 %v1247
    %v1285 = vunpack.c.l.b16 %v1248
    %v1286 = vunpack.c.l.b16 %v1249
    %v1287 = vunpack.c.l.b16 %v1250
    %v1288 = vunpack.c.l.b16 %v1251
    %v1289 = vpack.c.b16 %v1274, %v1273
    %v1290 = vpack.c.b16 %v1276, %v1275
    %v1291 = vpack.c.b16 %v1278, %v1277
    %v1292 = vpack.c.b16 %v1280, %v1279
    %v1293 = vpack.c.b16 %v1282, %v1281
    %v1294 = vpack.c.b16 %v1284, %v1283
    %v1295 = vpack.c.b16 %v1286, %v1285
    %v1296 = vpack.c.b16 %v1288, %v1287
    %1305 = vmatprep.subr.bf16.mxu0 0
    %1306 = vmatpush1.bf16.msra.mxu0 %v1289
    %1307 = vmatprep.subr.bf16.mxu0 0
    %1308 = vmatpush1.bf16.msra.mxu0 %v1290
    %1309 = vmatprep.subr.bf16.mxu0 0
    %1310 = vmatpush1.bf16.msra.mxu0 %v1291
    %1311 = vmatprep.subr.bf16.mxu0 0
    %1312 = vmatpush1.bf16.msra.mxu0 %v1292
    %1313 = vmatprep.subr.bf16.mxu0 0
    %1314 = vmatpush1.bf16.msra.mxu0 %v1293
    %1315 = vmatprep.subr.bf16.mxu0 0
    %1316 = vmatpush1.bf16.msra.mxu0 %v1294
    %1317 = vmatprep.subr.bf16.mxu0 0
    %1318 = vmatpush1.bf16.msra.mxu0 %v1295
    %1319 = vmatprep.subr.bf16.mxu0 0
    %1320 = vmatpush1.bf16.msra.mxu0 %v1296
    %1321 = vmatprep.subr.bf16.mxu0 0
    %1322 = vmatpush1.bf16.msra.mxu0 0
    %1323 = vmatprep.subr.bf16.mxu0 0
    %1324 = vmatpush1.bf16.msra.mxu0 0
    %1325 = vmatprep.subr.bf16.mxu0 0
    %1326 = vmatpush1.bf16.msra.mxu0 0
    %1327 = vmatprep.subr.bf16.mxu0 0
    %1328 = vmatpush1.bf16.msra.mxu0 0
    %1329 = vmatprep.subr.bf16.mxu0 0
    %1330 = vmatpush1.bf16.msra.mxu0 0
    %1331 = vmatprep.subr.bf16.mxu0 0
    %1332 = vmatpush1.bf16.msra.mxu0 0
    %1333 = vmatprep.subr.bf16.mxu0 0
    %1334 = vmatpush1.bf16.msra.mxu0 0
    %1335 = vmatprep.subr.bf16.mxu0 0
    %1336 = vmatpush1.bf16.msra.mxu0 0
    %1337 = vmatprep.mubr.bf16.mxu0 0
    %1338 = vmatmul.mubr.bf16.gmra.mrb[0].mxu0 %v892
    %v1339 = vpop.f32.mrb[0].mxu0
    %v1340 = vadd.f32 %v1256, %v1339
    %v1341 = vpop.f32.mrb[0].mxu0
    %v1342 = vpop.f32.mrb[0].mxu0
    %v1343 = vpop.f32.mrb[0].mxu0
    %1344 = vdwg.mxu0
    %1345 = vset.pattern.permute.xlu0 4
    %1346 = vperm.xlu0 %1345, %v160
    %v1347 = vpop.permute.xlu0 %1346
    %v1349 = vmul.f32 %v1347, %v1340
    %v1350 = vadd.f32 %v1235, %v1349
    %v1351 = vld [vmem:[#allocation14 + $0xc0] sm:$0xf]
    %v1352 = vld [vmem:[#allocation14 + $0xc4] sm:$0xf]
    %v1353 = vld [vmem:[#allocation14 + $0xc8] sm:$0xf]
    %v1354 = vld [vmem:[#allocation14 + $0xcc] sm:$0xf]
    %v1355 = vld [vmem:[#allocation14 + $0xd0] sm:$0xf]
    %v1356 = vld [vmem:[#allocation14 + $0xd4] sm:$0xf]
    %v1357 = vld [vmem:[#allocation14 + $0xd8] sm:$0xf]
    %v1358 = vld [vmem:[#allocation14 + $0xdc] sm:$0xf]
    %v1359 = vld [vmem:[#allocation14 + $0xe0] sm:$0xf]
    %v1360 = vld [vmem:[#allocation14 + $0xe4] sm:$0xf]
    %v1361 = vld [vmem:[#allocation14 + $0xe8] sm:$0xf]
    %v1362 = vld [vmem:[#allocation14 + $0xec] sm:$0xf]
    %v1363 = vld [vmem:[#allocation14 + $0xf0] sm:$0xf]
    %v1364 = vld [vmem:[#allocation14 + $0xf4] sm:$0xf]
    %v1365 = vld [vmem:[#allocation14 + $0xf8] sm:$0xf]
    %v1366 = vld [vmem:[#allocation14 + $0xfc] sm:$0xf]
    %v1367 = vld [vmem:[#allocation16 + $0x3] sm:$0x1]
    %v1368 = vlaneseq
    %v1369 = vshrl.u32 %v1368, 7
    %v1370 = vsub.s32 0, %v1369
    %v1371 = vrot.slane %v1367, %v1370
    %v1388 = vunpack.c.l.b16 %v1351
    %v1389 = vunpack.c.l.b16 %v1352
    %v1390 = vunpack.c.l.b16 %v1353
    %v1391 = vunpack.c.l.b16 %v1354
    %v1392 = vunpack.c.l.b16 %v1355
    %v1393 = vunpack.c.l.b16 %v1356
    %v1394 = vunpack.c.l.b16 %v1357
    %v1395 = vunpack.c.l.b16 %v1358
    %v1396 = vunpack.c.l.b16 %v1359
    %v1397 = vunpack.c.l.b16 %v1360
    %v1398 = vunpack.c.l.b16 %v1361
    %v1399 = vunpack.c.l.b16 %v1362
    %v1400 = vunpack.c.l.b16 %v1363
    %v1401 = vunpack.c.l.b16 %v1364
    %v1402 = vunpack.c.l.b16 %v1365
    %v1403 = vunpack.c.l.b16 %v1366
    %v1404 = vpack.c.b16 %v1389, %v1388
    %v1405 = vpack.c.b16 %v1391, %v1390
    %v1406 = vpack.c.b16 %v1393, %v1392
    %v1407 = vpack.c.b16 %v1395, %v1394
    %v1408 = vpack.c.b16 %v1397, %v1396
    %v1409 = vpack.c.b16 %v1399, %v1398
    %v1410 = vpack.c.b16 %v1401, %v1400
    %v1411 = vpack.c.b16 %v1403, %v1402
    %1420 = vmatprep.subr.bf16.mxu0 0
    %1421 = vmatpush1.bf16.msra.mxu0 %v1404
    %1422 = vmatprep.subr.bf16.mxu0 0
    %1423 = vmatpush1.bf16.msra.mxu0 %v1405
    %1424 = vmatprep.subr.bf16.mxu0 0
    %1425 = vmatpush1.bf16.msra.mxu0 %v1406
    %1426 = vmatprep.subr.bf16.mxu0 0
    %1427 = vmatpush1.bf16.msra.mxu0 %v1407
    %1428 = vmatprep.subr.bf16.mxu0 0
    %1429 = vmatpush1.bf16.msra.mxu0 %v1408
    %1430 = vmatprep.subr.bf16.mxu0 0
    %1431 = vmatpush1.bf16.msra.mxu0 %v1409
    %1432 = vmatprep.subr.bf16.mxu0 0
    %1433 = vmatpush1.bf16.msra.mxu0 %v1410
    %1434 = vmatprep.subr.bf16.mxu0 0
    %1435 = vmatpush1.bf16.msra.mxu0 %v1411
    %1436 = vmatprep.subr.bf16.mxu0 0
    %1437 = vmatpush1.bf16.msra.mxu0 0
    %1438 = vmatprep.subr.bf16.mxu0 0
    %1439 = vmatpush1.bf16.msra.mxu0 0
    %1440 = vmatprep.subr.bf16.mxu0 0
    %1441 = vmatpush1.bf16.msra.mxu0 0
    %1442 = vmatprep.subr.bf16.mxu0 0
    %1443 = vmatpush1.bf16.msra.mxu0 0
    %1444 = vmatprep.subr.bf16.mxu0 0
    %1445 = vmatpush1.bf16.msra.mxu0 0
    %1446 = vmatprep.subr.bf16.mxu0 0
    %1447 = vmatpush1.bf16.msra.mxu0 0
    %1448 = vmatprep.subr.bf16.mxu0 0
    %1449 = vmatpush1.bf16.msra.mxu0 0
    %1450 = vmatprep.subr.bf16.mxu0 0
    %1451 = vmatpush1.bf16.msra.mxu0 0
    %1452 = vmatprep.mubr.bf16.mxu0 0
    %1453 = vmatmul.mubr.bf16.gmra.mrb[0].mxu0 %v893
    %v1454 = vpop.f32.mrb[0].mxu0
    %v1455 = vadd.f32 %v1371, %v1454
    %v1456 = vpop.f32.mrb[0].mxu0
    %v1457 = vpop.f32.mrb[0].mxu0
    %v1458 = vpop.f32.mrb[0].mxu0
    %1459 = vdwg.mxu0
    %1460 = vset.pattern.permute.xlu0 5
    %1461 = vperm.xlu0 %1460, %v160
    %v1462 = vpop.permute.xlu0 %1461
    %v1464 = vmul.f32 %v1462, %v1455
    %v1465 = vadd.f32 %v1350, %v1464
    %vm1466 = vcmask 130048
    %1467 = vst.msk [vmem:[#allocation19] sm:$0xff] %vm1466, %v1465
    // Predicated region
    $region82: #{multip_net_forward.1} parent=1 // pred_check
      _
    $region83: #{multip_net_forward.1} parent=1 // pred_check_branch
      %1469 = sbr.rel (0) target = $region85
    $region84: #{multip_net_forward.1} parent=1 // pred_region
      %s1471 = ssub.s32 128, 128
      %1472 = vsyncadd [#allocation4], %s1471
      %s1474 = sshll.u32 [#allocation19], 4
      %s1475 = int_to_ptr.vmem [resolvable:$true] %s1474
      %1477 = dma.vmem_to_hbm [thread:$0]  %s1475, 128, %s10, [#allocation4]
    $region85: #{multip_net_forward.1} parent=1 // pred_fallthru
      _
    // Predicated region
    $region86: #{multip_net_forward.1} parent=1 // pred_check
      _
    $region87: #{multip_net_forward.1} parent=1 // pred_check_branch
      %1479 = sbr.rel (0) target = $region89
    $region88: #{multip_net_forward.1} parent=1 // pred_region
      %1480 = dma.done [#allocation4], 128
    $region89: #{multip_net_forward.1} parent=1 // pred_fallthru
      _
    %1481 = vsyncpa [#allocation3], 1
    %1482 = vsyncpa [#allocation6], 1
    %1483 = vsyncpa [#allocation9], 1
    %1484 = vsyncpa [#allocation12], 1
    %1485 = vsyncpa [#allocation15], 1
    %1486 = vsyncpa [#allocation18], 1
    %1487 = vsyncpa [#allocation4], 1

</llo_original>
